<compile_context>
chip_gen: v7x
topology: tpu7x:2x2x1
jax: 0.10.0
libtpu: 0.0.40
codegen_flags: <defaults>
</compile_context>

<pallas_src>
import functools

import jax
import jax.numpy as jnp
from jax import lax
from jax.experimental import pallas as pl
from jax.experimental.pallas import tpu as pltpu

NEG_INF = float("-inf")   # knock-out value for already-selected candidates
MASK_FILL = -1.0e30       # value given to bought (masked) items
PAD_FILL = -1.0e36        # value given to padded item columns (via the bias row)


def _round_up(x, m):
    return (x + m - 1) // m * m


def _topk_tile_kernel(u_ref, items_ref, bias_ref, mask_ref, out_ref,
                      vals_ref, idxs_ref, *, k):
    """One (batch-tile, item-tile) step of the streaming top-k.

    u_ref:     (TB, D)  compute dtype  user embeddings for this batch tile
    items_ref: (TN, D)  compute dtype  item embeddings for this item tile
    bias_ref:  (1, TN)  f32            item biases (PAD_FILL on padded columns)
    mask_ref:  (TB, TN) int8           bought-mask rows (nonzero == bought)
    out_ref:   (TB, k)  int32          top-k item ids (stored at the last tile)
    vals_ref:  (TB, k)  f32  scratch   running top-k values
    idxs_ref:  (TB, k)  int32 scratch  running top-k item ids
    """
    j = pl.program_id(1)
    num_item_tiles = pl.num_programs(1)
    tb, tn = mask_ref.shape
    big_idx = jnp.int32(2 ** 30)

    @pl.when(j == 0)
    def _init():
        vals_ref[...] = jnp.full((tb, k), NEG_INF, jnp.float32)
        idxs_ref[...] = jnp.zeros((tb, k), jnp.int32)

    # scores = U @ I^T + bias, contracting on the shared emb_dim axis
    # (no in-kernel transpose), f32 accumulation on the MXU.
    scores = lax.dot_general(
        u_ref[...], items_ref[...],
        dimension_numbers=(((1,), (1,)), ((), ())),
        preferred_element_type=jnp.float32)
    scores = scores + bias_ref[...]
    # Bought items get a constant strictly below every real score — equivalent
    # to the reference's "global_min - 1" for top-k purposes, including the
    # lowest-index-masked filler behaviour when a row has < k unmasked items.
    scores = jnp.where(mask_ref[...] != 0, MASK_FILL, scores)

    col_ids = lax.broadcasted_iota(jnp.int32, (tb, tn), 1) + j * tn

    # --- tile-local top-k (iterative argmax, ties -> lowest index) ---
    cur = scores
    tile_val_cols = []
    tile_idx_cols = []
    for _ in range(k):
        row_max = jnp.max(cur, axis=1, keepdims=True)                   # (TB, 1)
        is_max = cur == row_max
        sel = jnp.min(jnp.where(is_max, col_ids, big_idx),
                      axis=1, keepdims=True)                            # (TB, 1)
        tile_val_cols.append(row_max)
        tile_idx_cols.append(sel)
        cur = jnp.where(col_ids == sel, NEG_INF, cur)
    tile_vals = jnp.concatenate(tile_val_cols, axis=1)                  # (TB, k)
    tile_idxs = jnp.concatenate(tile_idx_cols, axis=1)                  # (TB, k)

    # --- merge with the running top-k (ties -> lowest global item id).
    # Running ids all come from earlier tiles (smaller ids), and each side is
    # already index-sorted among equal values, so a min-id tie-break over the
    # 2k candidates reproduces torch/lax.top_k ordering exactly.
    cand_vals = jnp.concatenate([vals_ref[...], tile_vals], axis=1)     # (TB, 2k)
    cand_idxs = jnp.concatenate([idxs_ref[...], tile_idxs], axis=1)
    new_val_cols = []
    new_idx_cols = []
    for _ in range(k):
        row_max = jnp.max(cand_vals, axis=1, keepdims=True)
        is_max = cand_vals == row_max
        sel = jnp.min(jnp.where(is_max, cand_idxs, big_idx),
                      axis=1, keepdims=True)
        new_val_cols.append(row_max)
        new_idx_cols.append(sel)
        cand_vals = jnp.where(cand_idxs == sel, NEG_INF, cand_vals)
    vals_ref[...] = jnp.concatenate(new_val_cols, axis=1)
    idxs_ref[...] = jnp.concatenate(new_idx_cols, axis=1)

    # Single store of the whole (TB, k) index block at the last item tile.
    @pl.when(j == num_item_tiles - 1)
    def _finalize():
        out_ref[...] = idxs_ref[...]


def generator_forward(users, emb_users, emb_items, bias_items, bought_mask,
                      k=5, *, compute_dtype=jnp.bfloat16,
                      tb_max=256, tn_max=1024):
    """JAX/Pallas equivalent of Generator.forward(users, k) (delete_bought=True).

    users:       (B,)                    int   user ids
    emb_users:   (num_users, D)          float user embedding table
    emb_items:   (num_items, D)          float item embedding table
    bias_items:  (num_items, 1)          float item biases
    bought_mask: (num_users, num_items)  0/1   (any dtype; int8 recommended)
    returns:     (B, k) int32 top-k item ids per user
    """
    B = int(users.shape[0])
    N, D = int(emb_items.shape[0]), int(emb_items.shape[1])
    if k > N:
        raise ValueError("k must be <= num_items")

    # Tile sizes: lane-dense item tiles; batch tiles a multiple of 32 so the
    # int8 mask / bf16 embedding blocks satisfy the TPU sublane tiling.
    TN = min(tn_max, _round_up(N, 128))
    N_pad = _round_up(N, TN)
    TB = min(tb_max, _round_up(B, 32))
    B_pad = _round_up(B, TB)

    users_pad = jnp.pad(users.astype(jnp.int32), (0, B_pad - B))

    # Glue gathers (pure indexing; tiny B*D user rows + int8 mask rows).
    # TODO(synk): gather mask/user rows in-kernel via
    # PrefetchScalarGridSpec(num_scalar_prefetch=1) data-dependent index_maps to
    # avoid materializing the gathered (B, N) mask rows in HBM.
    u_sel = jnp.take(emb_users, users_pad, axis=0).astype(compute_dtype)   # (B_pad, D)
    mask_sel = (jnp.take(bought_mask, users_pad, axis=0) != 0).astype(jnp.int8)

    items = emb_items.astype(compute_dtype)                                # (N, D)
    bias = bias_items.reshape(1, N).astype(jnp.float32)                    # (1, N)
    if N_pad > N:
        items = jnp.pad(items, ((0, N_pad - N), (0, 0)))
        bias = jnp.pad(bias, ((0, 0), (0, N_pad - N)), constant_values=PAD_FILL)
        mask_sel = jnp.pad(mask_sel, ((0, 0), (0, N_pad - N)))

    grid = (B_pad // TB, N_pad // TN)
    kernel = functools.partial(_topk_tile_kernel, k=k)

    out = pl.pallas_call(
        kernel,
        out_shape=jax.ShapeDtypeStruct((B_pad, k), jnp.int32),
        grid_spec=pltpu.PrefetchScalarGridSpec(
            num_scalar_prefetch=0,
            grid=grid,
            in_specs=[
                pl.BlockSpec((TB, D), lambda i, j: (i, 0)),     # user embeddings
                pl.BlockSpec((TN, D), lambda i, j: (j, 0)),     # item embeddings
                pl.BlockSpec((1, TN), lambda i, j: (0, j)),     # item biases
                pl.BlockSpec((TB, TN), lambda i, j: (i, j)),    # bought mask (int8)
            ],
            out_specs=pl.BlockSpec((TB, k), lambda i, j: (i, 0)),
            scratch_shapes=[
                pltpu.VMEM((TB, k), jnp.float32),   # running top-k values
                pltpu.VMEM((TB, k), jnp.int32),     # running top-k item ids
            ],
        ),
        compiler_params=pltpu.CompilerParams(
            dimension_semantics=("parallel", "arbitrary"),
            vmem_limit_bytes=64 * 1024 * 1024,
        ),
    )(u_sel, items, bias, mask_sel)
    return out[:B]


def _reference_forward(users, emb_users, emb_items, bias_items, bought_mask,
                       k=5, compute_dtype=jnp.bfloat16):
    """Pure-JAX reference of the PyTorch forward (same matmul dtype path)."""
    u = jnp.take(emb_users, users, axis=0).astype(compute_dtype)
    it = emb_items.astype(compute_dtype)
    scores = lax.dot_general(u, it, dimension_numbers=(((1,), (1,)), ((), ())),
                             preferred_element_type=jnp.float32)
    scores = scores + bias_items.reshape(1, -1).astype(jnp.float32)
    bought = jnp.take(bought_mask, users, axis=0) != 0
    scores = jnp.where(bought, jnp.min(scores) - 1.0, scores)
    _, top = lax.top_k(scores, k)
    return top


if __name__ == "__main__":
    # Small synthetic problem consistent with the module's __init__.
    num_users, num_items, emb_dim = 16, 64, 32
    batch, k = 8, 5

    key = jax.random.PRNGKey(0)
    k1, k2, k3, k4 = jax.random.split(key, 4)

    # nn.init.uniform_(-0.05, 0.05) for both embedding tables, zeros for bias.
    emb_users = jax.random.uniform(k1, (num_users, emb_dim), jnp.float32,
                                   minval=-0.05, maxval=0.05)
    emb_items = jax.random.uniform(k2, (num_items, emb_dim), jnp.float32,
                                   minval=-0.05, maxval=0.05)
    bias_items = jnp.zeros((num_items, 1), jnp.float32)

    # Deterministic synthetic bought mask (int8 0/1).  Give one user only three
    # unmasked items so the "row has < k unmasked items" filler path is tested.
    bought_mask = (jax.random.uniform(k3, (num_users, num_items)) < 0.2).astype(jnp.int8)
    heavy_row = jnp.ones((num_items,), jnp.int8).at[jnp.array([7, 20, 41])].set(0)
    bought_mask = bought_mask.at[3, :].set(heavy_row)

    users = jax.random.randint(k4, (batch,), 0, num_users, dtype=jnp.int32)
    users = users.at[0].set(3)   # ensure the heavily-masked user is in the batch

    fwd = jax.jit(functools.partial(generator_forward, k=k))
    top_k_items = jax.block_until_ready(
        fwd(users, emb_users, emb_items, bias_items, bought_mask))

    ref = _reference_forward(users, emb_users, emb_items, bias_items,
                             bought_mask, k=k)
    assert top_k_items.shape == (batch, k)
    assert top_k_items.dtype == jnp.int32
    assert jnp.array_equal(top_k_items, ref), (top_k_items, ref)

    print("KERNEL_OK")
</pallas_src>

<mosaic_0001>
module attributes {stable_mosaic.version = 11 : i64} {
  func.func @_topk_tile_kernel(%arg0: i32, %arg1: i32, %arg2: memref<32x32xbf16, #tpu.memory_space<vmem>>, %arg3: memref<128x32xbf16, #tpu.memory_space<vmem>>, %arg4: memref<1x128xf32, #tpu.memory_space<vmem>>, %arg5: memref<32x128xi8, #tpu.memory_space<vmem>>, %arg6: memref<32x5xi32, #tpu.memory_space<vmem>>, %arg7: memref<32x5xf32, #tpu.memory_space<vmem>>, %arg8: memref<32x5xi32, #tpu.memory_space<vmem>>) attributes {dimension_semantics = [#tpu.dimension_semantics<parallel>, #tpu.dimension_semantics<arbitrary>], iteration_bounds = array<i64: 1, 1>, scalar_prefetch = 0 : i64, scratch_operands = 2 : i64, tpu.core_type = #tpu.core_type<tc>, window_params = [{transform_indices = @transform_0, window_bounds = array<i64: 32, 32>}, {transform_indices = @transform_1, window_bounds = array<i64: 128, 32>}, {transform_indices = @transform_2, window_bounds = array<i64: 1, 128>}, {transform_indices = @transform_3, window_bounds = array<i64: 32, 128>}, {transform_indices = @transform_4, window_bounds = array<i64: 32, 5>}]} {
    %c0_i32 = arith.constant 0 : i32
    %0 = arith.cmpi eq, %arg1, %c0_i32 : i32
    %1 = arith.extui %0 : i1 to i32
    %c0_i32_0 = arith.constant 0 : i32
    %2 = arith.cmpi ne, %1, %c0_i32_0 : i32
    scf.if %2 {
      %cst_56 = arith.constant 0xFF800000 : f32
      %143 = vector.broadcast %cst_56 : f32 to vector<32x5xf32>
      %c0_57 = arith.constant 0 : index
      %c0_58 = arith.constant 0 : index
      %144 = vector.load %arg7[%c0_57, %c0_58] : memref<32x5xf32, #tpu.memory_space<vmem>>, vector<32x5xf32>
      tpu.vector_store %arg7[%c0_57, %c0_58], %143 {strides = array<i32>} : memref<32x5xf32, #tpu.memory_space<vmem>>, vector<32x5xf32>,
      %c0_i32_59 = arith.constant 0 : i32
      %145 = vector.broadcast %c0_i32_59 : i32 to vector<32x5xi32>
      %c0_60 = arith.constant 0 : index
      %c0_61 = arith.constant 0 : index
      %146 = vector.load %arg8[%c0_60, %c0_61] : memref<32x5xi32, #tpu.memory_space<vmem>>, vector<32x5xi32>
      tpu.vector_store %arg8[%c0_60, %c0_61], %145 {strides = array<i32>} : memref<32x5xi32, #tpu.memory_space<vmem>>, vector<32x5xi32>,
    } else {
    }
    %c0 = arith.constant 0 : index
    %c0_1 = arith.constant 0 : index
    %3 = vector.load %arg2[%c0, %c0_1] : memref<32x32xbf16, #tpu.memory_space<vmem>>, vector<32x32xbf16>
    %c0_2 = arith.constant 0 : index
    %c0_3 = arith.constant 0 : index
    %4 = vector.load %arg3[%c0_2, %c0_3] : memref<128x32xbf16, #tpu.memory_space<vmem>>, vector<128x32xbf16>
    %cst = arith.constant dense<0.000000e+00> : vector<32x128xf32>
    %5 = tpu.matmul %3, %4, %cst {dimension_numbers = #tpu.dot_dimension_numbers<[1], [1], [0], [0], [0, 0, 1, 0], [], []>} : vector<32x32xbf16>, vector<128x32xbf16>, vector<32x128xf32> -> vector<32x128xf32>
    %c0_4 = arith.constant 0 : index
    %c0_5 = arith.constant 0 : index
    %6 = vector.load %arg4[%c0_4, %c0_5] : memref<1x128xf32, #tpu.memory_space<vmem>>, vector<1x128xf32>
    %7 = vector.broadcast %6 : vector<1x128xf32> to vector<32x128xf32>
    %8 = arith.addf %5, %7 : vector<32x128xf32>
    %c0_6 = arith.constant 0 : index
    %c0_7 = arith.constant 0 : index
    %9 = vector.load %arg5[%c0_6, %c0_7] : memref<32x128xi8, #tpu.memory_space<vmem>>, vector<32x128xi8>
    %c0_i8 = arith.constant 0 : i8
    %10 = vector.broadcast %c0_i8 : i8 to vector<32x128xi8>
    %11 = arith.cmpi ne, %9, %10 : vector<32x128xi8>
    %cst_8 = arith.constant -1.000000e+30 : f32
    %12 = vector.broadcast %cst_8 : f32 to vector<32x128xf32>
    %13 = arith.select %11, %12, %8 : vector<32x128xi1>, vector<32x128xf32>
    %14 = tpu.iota {dimensions = array<i32: 1>} : vector<32x128xi32>
    %c128_i32 = arith.constant 128 : i32
    %15 = arith.muli %arg1, %c128_i32 : i32
    %16 = vector.broadcast %15 : i32 to vector<32x128xi32>
    %17 = arith.addi %14, %16 : vector<32x128xi32>
    %cst_9 = arith.constant dense<0xFF800000> : vector<32xf32>
    %18 = vector.multi_reduction <maximumf>, %13, %cst_9 [1] : vector<32x128xf32> to vector<32xf32>
    %19 = vector.shape_cast %18 : vector<32xf32> to vector<32x1xf32>
    %20 = vector.broadcast %19 : vector<32x1xf32> to vector<32x128xf32>
    %21 = arith.cmpf oeq, %13, %20 : vector<32x128xf32>
    %c1073741824_i32 = arith.constant 1073741824 : i32
    %22 = vector.broadcast %c1073741824_i32 : i32 to vector<32x128xi32>
    %23 = arith.select %21, %17, %22 : vector<32x128xi1>, vector<32x128xi32>
    %cst_10 = arith.constant dense<2147483647> : vector<32xi32>
    %24 = vector.multi_reduction <minsi>, %23, %cst_10 [1] : vector<32x128xi32> to vector<32xi32>
    %25 = vector.shape_cast %24 : vector<32xi32> to vector<32x1xi32>
    %26 = vector.broadcast %25 : vector<32x1xi32> to vector<32x128xi32>
    %27 = arith.cmpi eq, %17, %26 : vector<32x128xi32>
    %cst_11 = arith.constant 0xFF800000 : f32
    %28 = vector.broadcast %cst_11 : f32 to vector<32x128xf32>
    %29 = arith.select %27, %28, %13 : vector<32x128xi1>, vector<32x128xf32>
    %cst_12 = arith.constant dense<0xFF800000> : vector<32xf32>
    %30 = vector.multi_reduction <maximumf>, %29, %cst_12 [1] : vector<32x128xf32> to vector<32xf32>
    %31 = vector.shape_cast %30 : vector<32xf32> to vector<32x1xf32>
    %32 = vector.broadcast %31 : vector<32x1xf32> to vector<32x128xf32>
    %33 = arith.cmpf oeq, %29, %32 : vector<32x128xf32>
    %c1073741824_i32_13 = arith.constant 1073741824 : i32
    %34 = vector.broadcast %c1073741824_i32_13 : i32 to vector<32x128xi32>
    %35 = arith.select %33, %17, %34 : vector<32x128xi1>, vector<32x128xi32>
    %cst_14 = arith.constant dense<2147483647> : vector<32xi32>
    %36 = vector.multi_reduction <minsi>, %35, %cst_14 [1] : vector<32x128xi32> to vector<32xi32>
    %37 = vector.shape_cast %36 : vector<32xi32> to vector<32x1xi32>
    %38 = vector.broadcast %37 : vector<32x1xi32> to vector<32x128xi32>
    %39 = arith.cmpi eq, %17, %38 : vector<32x128xi32>
    %cst_15 = arith.constant 0xFF800000 : f32
    %40 = vector.broadcast %cst_15 : f32 to vector<32x128xf32>
    %41 = arith.select %39, %40, %29 : vector<32x128xi1>, vector<32x128xf32>
    %cst_16 = arith.constant dense<0xFF800000> : vector<32xf32>
    %42 = vector.multi_reduction <maximumf>, %41, %cst_16 [1] : vector<32x128xf32> to vector<32xf32>
    %43 = vector.shape_cast %42 : vector<32xf32> to vector<32x1xf32>
    %44 = vector.broadcast %43 : vector<32x1xf32> to vector<32x128xf32>
    %45 = arith.cmpf oeq, %41, %44 : vector<32x128xf32>
    %c1073741824_i32_17 = arith.constant 1073741824 : i32
    %46 = vector.broadcast %c1073741824_i32_17 : i32 to vector<32x128xi32>
    %47 = arith.select %45, %17, %46 : vector<32x128xi1>, vector<32x128xi32>
    %cst_18 = arith.constant dense<2147483647> : vector<32xi32>
    %48 = vector.multi_reduction <minsi>, %47, %cst_18 [1] : vector<32x128xi32> to vector<32xi32>
    %49 = vector.shape_cast %48 : vector<32xi32> to vector<32x1xi32>
    %50 = vector.broadcast %49 : vector<32x1xi32> to vector<32x128xi32>
    %51 = arith.cmpi eq, %17, %50 : vector<32x128xi32>
    %cst_19 = arith.constant 0xFF800000 : f32
    %52 = vector.broadcast %cst_19 : f32 to vector<32x128xf32>
    %53 = arith.select %51, %52, %41 : vector<32x128xi1>, vector<32x128xf32>
    %cst_20 = arith.constant dense<0xFF800000> : vector<32xf32>
    %54 = vector.multi_reduction <maximumf>, %53, %cst_20 [1] : vector<32x128xf32> to vector<32xf32>
    %55 = vector.shape_cast %54 : vector<32xf32> to vector<32x1xf32>
    %56 = vector.broadcast %55 : vector<32x1xf32> to vector<32x128xf32>
    %57 = arith.cmpf oeq, %53, %56 : vector<32x128xf32>
    %c1073741824_i32_21 = arith.constant 1073741824 : i32
    %58 = vector.broadcast %c1073741824_i32_21 : i32 to vector<32x128xi32>
    %59 = arith.select %57, %17, %58 : vector<32x128xi1>, vector<32x128xi32>
    %cst_22 = arith.constant dense<2147483647> : vector<32xi32>
    %60 = vector.multi_reduction <minsi>, %59, %cst_22 [1] : vector<32x128xi32> to vector<32xi32>
    %61 = vector.shape_cast %60 : vector<32xi32> to vector<32x1xi32>
    %62 = vector.broadcast %61 : vector<32x1xi32> to vector<32x128xi32>
    %63 = arith.cmpi eq, %17, %62 : vector<32x128xi32>
    %cst_23 = arith.constant 0xFF800000 : f32
    %64 = vector.broadcast %cst_23 : f32 to vector<32x128xf32>
    %65 = arith.select %63, %64, %53 : vector<32x128xi1>, vector<32x128xf32>
    %cst_24 = arith.constant dense<0xFF800000> : vector<32xf32>
    %66 = vector.multi_reduction <maximumf>, %65, %cst_24 [1] : vector<32x128xf32> to vector<32xf32>
    %67 = vector.shape_cast %66 : vector<32xf32> to vector<32x1xf32>
    %68 = vector.broadcast %67 : vector<32x1xf32> to vector<32x128xf32>
    %69 = arith.cmpf oeq, %65, %68 : vector<32x128xf32>
    %c1073741824_i32_25 = arith.constant 1073741824 : i32
    %70 = vector.broadcast %c1073741824_i32_25 : i32 to vector<32x128xi32>
    %71 = arith.select %69, %17, %70 : vector<32x128xi1>, vector<32x128xi32>
    %cst_26 = arith.constant dense<2147483647> : vector<32xi32>
    %72 = vector.multi_reduction <minsi>, %71, %cst_26 [1] : vector<32x128xi32> to vector<32xi32>
    %73 = vector.shape_cast %72 : vector<32xi32> to vector<32x1xi32>
    %74 = tpu.concatenate %19, %31, %43, %55, %67 in 1 : vector<32x1xf32>, vector<32x1xf32>, vector<32x1xf32>, vector<32x1xf32>, vector<32x1xf32> -> vector<32x5xf32>
    %75 = tpu.concatenate %25, %37, %49, %61, %73 in 1 : vector<32x1xi32>, vector<32x1xi32>, vector<32x1xi32>, vector<32x1xi32>, vector<32x1xi32> -> vector<32x5xi32>
    %c0_27 = arith.constant 0 : index
    %c0_28 = arith.constant 0 : index
    %76 = vector.load %arg7[%c0_27, %c0_28] : memref<32x5xf32, #tpu.memory_space<vmem>>, vector<32x5xf32>
    %77 = tpu.concatenate %76, %74 in 1 : vector<32x5xf32>, vector<32x5xf32> -> vector<32x10xf32>
    %c0_29 = arith.constant 0 : index
    %c0_30 = arith.constant 0 : index
    %78 = vector.load %arg8[%c0_29, %c0_30] : memref<32x5xi32, #tpu.memory_space<vmem>>, vector<32x5xi32>
    %79 = tpu.concatenate %78, %75 in 1 : vector<32x5xi32>, vector<32x5xi32> -> vector<32x10xi32>
    %cst_31 = arith.constant dense<0xFF800000> : vector<32xf32>
    %80 = vector.multi_reduction <maximumf>, %77, %cst_31 [1] : vector<32x10xf32> to vector<32xf32>
    %81 = vector.shape_cast %80 : vector<32xf32> to vector<32x1xf32>
    %82 = vector.broadcast %81 : vector<32x1xf32> to vector<32x10xf32>
    %83 = arith.cmpf oeq, %77, %82 : vector<32x10xf32>
    %c1073741824_i32_32 = arith.constant 1073741824 : i32
    %84 = vector.broadcast %c1073741824_i32_32 : i32 to vector<32x10xi32>
    %85 = arith.select %83, %79, %84 : vector<32x10xi1>, vector<32x10xi32>
    %cst_33 = arith.constant dense<2147483647> : vector<32xi32>
    %86 = vector.multi_reduction <minsi>, %85, %cst_33 [1] : vector<32x10xi32> to vector<32xi32>
    %87 = vector.shape_cast %86 : vector<32xi32> to vector<32x1xi32>
    %88 = vector.broadcast %87 : vector<32x1xi32> to vector<32x10xi32>
    %89 = arith.cmpi eq, %79, %88 : vector<32x10xi32>
    %cst_34 = arith.constant 0xFF800000 : f32
    %90 = vector.broadcast %cst_34 : f32 to vector<32x10xf32>
    %91 = arith.select %89, %90, %77 : vector<32x10xi1>, vector<32x10xf32>
    %cst_35 = arith.constant dense<0xFF800000> : vector<32xf32>
    %92 = vector.multi_reduction <maximumf>, %91, %cst_35 [1] : vector<32x10xf32> to vector<32xf32>
    %93 = vector.shape_cast %92 : vector<32xf32> to vector<32x1xf32>
    %94 = vector.broadcast %93 : vector<32x1xf32> to vector<32x10xf32>
    %95 = arith.cmpf oeq, %91, %94 : vector<32x10xf32>
    %c1073741824_i32_36 = arith.constant 1073741824 : i32
    %96 = vector.broadcast %c1073741824_i32_36 : i32 to vector<32x10xi32>
    %97 = arith.select %95, %79, %96 : vector<32x10xi1>, vector<32x10xi32>
    %cst_37 = arith.constant dense<2147483647> : vector<32xi32>
    %98 = vector.multi_reduction <minsi>, %97, %cst_37 [1] : vector<32x10xi32> to vector<32xi32>
    %99 = vector.shape_cast %98 : vector<32xi32> to vector<32x1xi32>
    %100 = vector.broadcast %99 : vector<32x1xi32> to vector<32x10xi32>
    %101 = arith.cmpi eq, %79, %100 : vector<32x10xi32>
    %cst_38 = arith.constant 0xFF800000 : f32
    %102 = vector.broadcast %cst_38 : f32 to vector<32x10xf32>
    %103 = arith.select %101, %102, %91 : vector<32x10xi1>, vector<32x10xf32>
    %cst_39 = arith.constant dense<0xFF800000> : vector<32xf32>
    %104 = vector.multi_reduction <maximumf>, %103, %cst_39 [1] : vector<32x10xf32> to vector<32xf32>
    %105 = vector.shape_cast %104 : vector<32xf32> to vector<32x1xf32>
    %106 = vector.broadcast %105 : vector<32x1xf32> to vector<32x10xf32>
    %107 = arith.cmpf oeq, %103, %106 : vector<32x10xf32>
    %c1073741824_i32_40 = arith.constant 1073741824 : i32
    %108 = vector.broadcast %c1073741824_i32_40 : i32 to vector<32x10xi32>
    %109 = arith.select %107, %79, %108 : vector<32x10xi1>, vector<32x10xi32>
    %cst_41 = arith.constant dense<2147483647> : vector<32xi32>
    %110 = vector.multi_reduction <minsi>, %109, %cst_41 [1] : vector<32x10xi32> to vector<32xi32>
    %111 = vector.shape_cast %110 : vector<32xi32> to vector<32x1xi32>
    %112 = vector.broadcast %111 : vector<32x1xi32> to vector<32x10xi32>
    %113 = arith.cmpi eq, %79, %112 : vector<32x10xi32>
    %cst_42 = arith.constant 0xFF800000 : f32
    %114 = vector.broadcast %cst_42 : f32 to vector<32x10xf32>
    %115 = arith.select %113, %114, %103 : vector<32x10xi1>, vector<32x10xf32>
    %cst_43 = arith.constant dense<0xFF800000> : vector<32xf32>
    %116 = vector.multi_reduction <maximumf>, %115, %cst_43 [1] : vector<32x10xf32> to vector<32xf32>
    %117 = vector.shape_cast %116 : vector<32xf32> to vector<32x1xf32>
    %118 = vector.broadcast %117 : vector<32x1xf32> to vector<32x10xf32>
    %119 = arith.cmpf oeq, %115, %118 : vector<32x10xf32>
    %c1073741824_i32_44 = arith.constant 1073741824 : i32
    %120 = vector.broadcast %c1073741824_i32_44 : i32 to vector<32x10xi32>
    %121 = arith.select %119, %79, %120 : vector<32x10xi1>, vector<32x10xi32>
    %cst_45 = arith.constant dense<2147483647> : vector<32xi32>
    %122 = vector.multi_reduction <minsi>, %121, %cst_45 [1] : vector<32x10xi32> to vector<32xi32>
    %123 = vector.shape_cast %122 : vector<32xi32> to vector<32x1xi32>
    %124 = vector.broadcast %123 : vector<32x1xi32> to vector<32x10xi32>
    %125 = arith.cmpi eq, %79, %124 : vector<32x10xi32>
    %cst_46 = arith.constant 0xFF800000 : f32
    %126 = vector.broadcast %cst_46 : f32 to vector<32x10xf32>
    %127 = arith.select %125, %126, %115 : vector<32x10xi1>, vector<32x10xf32>
    %cst_47 = arith.constant dense<0xFF800000> : vector<32xf32>
    %128 = vector.multi_reduction <maximumf>, %127, %cst_47 [1] : vector<32x10xf32> to vector<32xf32>
    %129 = vector.shape_cast %128 : vector<32xf32> to vector<32x1xf32>
    %130 = vector.broadcast %129 : vector<32x1xf32> to vector<32x10xf32>
    %131 = arith.cmpf oeq, %127, %130 : vector<32x10xf32>
    %c1073741824_i32_48 = arith.constant 1073741824 : i32
    %132 = vector.broadcast %c1073741824_i32_48 : i32 to vector<32x10xi32>
    %133 = arith.select %131, %79, %132 : vector<32x10xi1>, vector<32x10xi32>
    %cst_49 = arith.constant dense<2147483647> : vector<32xi32>
    %134 = vector.multi_reduction <minsi>, %133, %cst_49 [1] : vector<32x10xi32> to vector<32xi32>
    %135 = vector.shape_cast %134 : vector<32xi32> to vector<32x1xi32>
    %136 = tpu.concatenate %81, %93, %105, %117, %129 in 1 : vector<32x1xf32>, vector<32x1xf32>, vector<32x1xf32>, vector<32x1xf32>, vector<32x1xf32> -> vector<32x5xf32>
    %c0_50 = arith.constant 0 : index
    %c0_51 = arith.constant 0 : index
    %137 = vector.load %arg7[%c0_50, %c0_51] : memref<32x5xf32, #tpu.memory_space<vmem>>, vector<32x5xf32>
    tpu.vector_store %arg7[%c0_50, %c0_51], %136 {strides = array<i32>} : memref<32x5xf32, #tpu.memory_space<vmem>>, vector<32x5xf32>,
    %138 = tpu.concatenate %87, %99, %111, %123, %135 in 1 : vector<32x1xi32>, vector<32x1xi32>, vector<32x1xi32>, vector<32x1xi32>, vector<32x1xi32> -> vector<32x5xi32>
    %c0_52 = arith.constant 0 : index
    %c0_53 = arith.constant 0 : index
    %139 = vector.load %arg8[%c0_52, %c0_53] : memref<32x5xi32, #tpu.memory_space<vmem>>, vector<32x5xi32>
    tpu.vector_store %arg8[%c0_52, %c0_53], %138 {strides = array<i32>} : memref<32x5xi32, #tpu.memory_space<vmem>>, vector<32x5xi32>,
    %c0_i32_54 = arith.constant 0 : i32
    %140 = arith.cmpi eq, %arg1, %c0_i32_54 : i32
    %141 = arith.extui %140 : i1 to i32
    %c0_i32_55 = arith.constant 0 : i32
    %142 = arith.cmpi ne, %141, %c0_i32_55 : i32
    scf.if %142 {
      %c0_56 = arith.constant 0 : index
      %c0_57 = arith.constant 0 : index
      %143 = vector.load %arg8[%c0_56, %c0_57] : memref<32x5xi32, #tpu.memory_space<vmem>>, vector<32x5xi32>
      %c0_58 = arith.constant 0 : index
      %c0_59 = arith.constant 0 : index
      %144 = vector.load %arg6[%c0_58, %c0_59] : memref<32x5xi32, #tpu.memory_space<vmem>>, vector<32x5xi32>
      tpu.vector_store %arg6[%c0_58, %c0_59], %143 {strides = array<i32>} : memref<32x5xi32, #tpu.memory_space<vmem>>, vector<32x5xi32>,
    } else {
    }
    return
  }
  func.func @transform_0(%arg0: i32, %arg1: i32) -> (i32, i32) {
    %c0_i32 = arith.constant 0 : i32
    %c0_i32_0 = arith.constant 0 : i32
    return %arg0, %c0_i32 : i32, i32
  }
  func.func @transform_1(%arg0: i32, %arg1: i32) -> (i32, i32) {
    %c0_i32 = arith.constant 0 : i32
    %c0_i32_0 = arith.constant 0 : i32
    return %arg1, %c0_i32 : i32, i32
  }
  func.func @transform_2(%arg0: i32, %arg1: i32) -> (i32, i32) {
    %c0_i32 = arith.constant 0 : i32
    %c0_i32_0 = arith.constant 0 : i32
    return %c0_i32, %arg1 : i32, i32
  }
  func.func @transform_3(%arg0: i32, %arg1: i32) -> (i32, i32) {
    %c0_i32 = arith.constant 0 : i32
    return %arg0, %arg1 : i32, i32
  }
  func.func @transform_4(%arg0: i32, %arg1: i32) -> (i32, i32) {
    %c0_i32 = arith.constant 0 : i32
    %c0_i32_0 = arith.constant 0 : i32
    return %arg0, %c0_i32 : i32, i32
  }
}

</mosaic_0001>

<llo_original>
// kernel: generator_forward.1
$region0: #{generator_forward.1}
  #allocation0 [shape = 'u32[]', space=smem, size = 0x4, offset = 0x4, fixed_abs, tag = 'smem constant byte address 0x4 - core index']
  #allocation1 [shape = 'u32[144,128]{1,0:T(1,128)}', space=vmem, size = 0x12000, scoped, tag = 'internal scratch']
  #allocation2 [shape = 'f32[32,5]{1,0:T(8,128)}', space=vmem, size = 0x4000, scoped, tag = 'scratch operand']
  #allocation3 [shape = 's32[32,5]{1,0:T(8,128)}', space=vmem, size = 0x4000, scoped, tag = 'scratch operand']
  %s0 = inlined_call_operand.hbm [shape: bf16[32,32], index: 0, kind: input, shape index: {}]
  %s1 = inlined_call_operand.hbm [shape: bf16[128,32], index: 1, kind: input, shape index: {}]
  %s2 = inlined_call_operand.hbm [shape: f32[1,128], index: 2, kind: input, shape index: {}]
  %s3 = inlined_call_operand.hbm [shape: s8[32,128], index: 3, kind: input, shape index: {}]
  %s4 = inlined_call_operand.hbm [shape: s32[32,5], index: 4, kind: output, shape index: {}]
  %s5 = sld [smem:[#allocation0]]
  $region50: #{generator_forward.1} parent=0
    _
  %s7 = ssub.s32 1, %s5
  %s8 = scalar_select 0, %s7, %s5
  $region1: #{generator_forward.1} parent=0
    #allocation4 [shape = 'u8[8192]{0}', space=vmem, size = 0x2000, scoped, tag = 'input window, operand 0, single buffered']
    #allocation5 [shape = 's32[1]{0}', space=sflag, size = 0x4, scoped, tag = 'scoped memory for generator_forward.1']
    #allocation6 [shape = 's32[1]{0}', space=sflag, size = 0x4, scoped, tag = 'scoped memory for generator_forward.1']
    #allocation7 [shape = 'u8[32768]{0}', space=vmem, size = 0x8000, scoped, tag = 'input window, operand 1, single buffered']
    #allocation8 [shape = 's32[1]{0}', space=sflag, size = 0x4, scoped, tag = 'scoped memory for generator_forward.1']
    #allocation9 [shape = 'u8[512]{0}', space=vmem, size = 0x400, scoped, tag = 'input window, operand 2, single buffered']
    #allocation10 [shape = 'u8[4096]{0}', space=vmem, size = 0x1000, scoped, tag = 'input window, operand 3, single buffered']
    #allocation11 [shape = 's32[1]{0}', space=sflag, size = 0x4, scoped, tag = 'scoped memory for generator_forward.1']
    #allocation12 [shape = 'u8[16384]{0}', space=vmem, size = 0x4000, scoped, tag = 'output window, operand 0, single buffered']
    %9 = vsyncpa [#allocation5], 0
    %10 = vsyncpa [#allocation8], 0
    %11 = vsyncpa [#allocation11], 0
    %12 = vsyncpa [#allocation6], 0
    // Predicated region
    $region2: #{generator_forward.1} parent=1 // pred_check
      _
    $region3: #{generator_forward.1} parent=1 // pred_check_branch
      %14 = sbr.rel (0) target = $region5
    $region4: #{generator_forward.1} parent=1 // pred_region
      %s16 = ssub.s32 256, 256
      %17 = vsyncadd [#allocation5], %s16
      %s18 = sshll.u32 [#allocation4], 4
      %s19 = int_to_ptr.vmem [resolvable:$true] %s18
      %24 = dma.hbm_to_vmem [thread:$0]  %s0, 256, %s19, [#allocation5], 64, 64, 4
    $region5: #{generator_forward.1} parent=1 // pred_fallthru
      _
    // Predicated region
    $region6: #{generator_forward.1} parent=1 // pred_check
      _
    $region7: #{generator_forward.1} parent=1 // pred_check_branch
      %26 = sbr.rel (0) target = $region9
    $region8: #{generator_forward.1} parent=1 // pred_region
      %s28 = ssub.s32 1024, 1024
      %29 = vsyncadd [#allocation8], %s28
      %s30 = sshll.u32 [#allocation7], 4
      %s31 = int_to_ptr.vmem [resolvable:$true] %s30
      %36 = dma.hbm_to_vmem [thread:$0]  %s1, 1024, %s31, [#allocation8], 64, 64, 4
    $region9: #{generator_forward.1} parent=1 // pred_fallthru
      _
    // Predicated region
    $region10: #{generator_forward.1} parent=1 // pred_check
      _
    $region11: #{generator_forward.1} parent=1 // pred_check_branch
      %38 = sbr.rel (0) target = $region13
    $region12: #{generator_forward.1} parent=1 // pred_region
      %s40 = ssub.s32 16, 16
      %41 = vsyncadd [#allocation8], %s40
      %s43 = sshll.u32 [#allocation9], 4
      %s44 = int_to_ptr.vmem [resolvable:$true] %s43
      %46 = dma.hbm_to_vmem [thread:$0]  %s2, 16, %s44, [#allocation8]
    $region13: #{generator_forward.1} parent=1 // pred_fallthru
      _
    // Predicated region
    $region14: #{generator_forward.1} parent=1 // pred_check
      _
    $region15: #{generator_forward.1} parent=1 // pred_check_branch
      %48 = sbr.rel (0) target = $region17
    $region16: #{generator_forward.1} parent=1 // pred_region
      %s50 = ssub.s32 128, 128
      %51 = vsyncadd [#allocation11], %s50
      %s53 = sshll.u32 [#allocation10], 4
      %s54 = int_to_ptr.vmem [resolvable:$true] %s53
      %56 = dma.hbm_to_vmem [thread:$0]  %s3, 128, %s54, [#allocation11]
    $region17: #{generator_forward.1} parent=1 // pred_fallthru
      _
    // Predicated region
    $region18: #{generator_forward.1} parent=1 // pred_check
      _
    $region19: #{generator_forward.1} parent=1 // pred_check_branch
      %58 = sbr.rel (0) target = $region21
    $region20: #{generator_forward.1} parent=1 // pred_region
      %59 = dma.done [#allocation5], 256
    $region21: #{generator_forward.1} parent=1 // pred_fallthru
      _
    // Predicated region
    $region22: #{generator_forward.1} parent=1 // pred_check
      _
    $region23: #{generator_forward.1} parent=1 // pred_check_branch
      %61 = sbr.rel (0) target = $region25
    $region24: #{generator_forward.1} parent=1 // pred_region
      %62 = dma.done [#allocation8], 1024
    $region25: #{generator_forward.1} parent=1 // pred_fallthru
      _
    // Predicated region
    $region26: #{generator_forward.1} parent=1 // pred_check
      _
    $region27: #{generator_forward.1} parent=1 // pred_check_branch
      %64 = sbr.rel (0) target = $region29
    $region28: #{generator_forward.1} parent=1 // pred_region
      %65 = dma.done [#allocation8], 16
    $region29: #{generator_forward.1} parent=1 // pred_fallthru
      _
    // Predicated region
    $region30: #{generator_forward.1} parent=1 // pred_check
      _
    $region31: #{generator_forward.1} parent=1 // pred_check_branch
      %67 = sbr.rel (0) target = $region33
    $region32: #{generator_forward.1} parent=1 // pred_region
      %68 = dma.done [#allocation11], 128
    $region33: #{generator_forward.1} parent=1 // pred_fallthru
      _
    %p72 = scmp.eq.s32.totalorder 0, 0
    // Predicated region
    $region34: #{generator_forward.1} parent=1 // pred_check
      %p73 = pneg %p72
    $region35: #{generator_forward.1} parent=1 // pred_check_branch
      %75 = sbr.rel (%p73) target = $region37
    $region36: #{generator_forward.1} parent=1 // pred_region
      %vm76 = vcmask 39936
      %77 = vst.msk [vmem:[#allocation2] sm:$0xff] %vm76, -inf
      %78 = vst.msk [vmem:[#allocation2 + $0x8] sm:$0xff] %vm76, -inf
      %79 = vst.msk [vmem:[#allocation2 + $0x10] sm:$0xff] %vm76, -inf
      %80 = vst.msk [vmem:[#allocation2 + $0x18] sm:$0xff] %vm76, -inf
      %81 = vst.msk [vmem:[#allocation3] sm:$0xff] %vm76, 0
      %82 = vst.msk [vmem:[#allocation3 + $0x8] sm:$0xff] %vm76, 0
      %83 = vst.msk [vmem:[#allocation3 + $0x10] sm:$0xff] %vm76, 0
      %84 = vst.msk [vmem:[#allocation3 + $0x18] sm:$0xff] %vm76, 0
    $region37: #{generator_forward.1} parent=1 // pred_fallthru
      _
    %v85 = vld [vmem:[#allocation4] sm:$0xf]
    %v86 = vld [vmem:[#allocation4 + $0x4] sm:$0xf]
    %v87 = vld [vmem:[#allocation4 + $0x8] sm:$0xf]
    %v88 = vld [vmem:[#allocation4 + $0xc] sm:$0xf]
    %v89 = vld [vmem:[#allocation7] sm:$0xf]
    %v90 = vld [vmem:[#allocation7 + $0x4] sm:$0xf]
    %v91 = vld [vmem:[#allocation7 + $0x8] sm:$0xf]
    %v92 = vld [vmem:[#allocation7 + $0xc] sm:$0xf]
    %v93 = vld [vmem:[#allocation7 + $0x10] sm:$0xf]
    %v94 = vld [vmem:[#allocation7 + $0x14] sm:$0xf]
    %v95 = vld [vmem:[#allocation7 + $0x18] sm:$0xf]
    %v96 = vld [vmem:[#allocation7 + $0x1c] sm:$0xf]
    %v97 = vld [vmem:[#allocation7 + $0x20] sm:$0xf]
    %v98 = vld [vmem:[#allocation7 + $0x24] sm:$0xf]
    %v99 = vld [vmem:[#allocation7 + $0x28] sm:$0xf]
    %v100 = vld [vmem:[#allocation7 + $0x2c] sm:$0xf]
    %v101 = vld [vmem:[#allocation7 + $0x30] sm:$0xf]
    %v102 = vld [vmem:[#allocation7 + $0x34] sm:$0xf]
    %v103 = vld [vmem:[#allocation7 + $0x38] sm:$0xf]
    %v104 = vld [vmem:[#allocation7 + $0x3c] sm:$0xf]
    %v105 = vld [vmem:[#allocation9] sm:$0x1]
    %v107 = vlaneseq
    %v108 = vshrl.u32 %v107, 7
    %v109 = vsub.s32 0, %v108
    %v110 = vrot.slane %v105, %v109
    %v116 = vunpack.c.l.b16 %v85
    %v117 = vunpack.c.l.b16 %v86
    %v118 = vunpack.c.l.b16 %v87
    %v119 = vunpack.c.l.b16 %v88
    %v120 = vpack.c.b16 %v117, %v116
    %v121 = vpack.c.b16 %v119, %v118
    %v138 = vunpack.c.l.b16 %v89
    %v139 = vunpack.c.l.b16 %v90
    %v140 = vunpack.c.l.b16 %v91
    %v141 = vunpack.c.l.b16 %v92
    %v142 = vunpack.c.l.b16 %v93
    %v143 = vunpack.c.l.b16 %v94
    %v144 = vunpack.c.l.b16 %v95
    %v145 = vunpack.c.l.b16 %v96
    %v146 = vunpack.c.l.b16 %v97
    %v147 = vunpack.c.l.b16 %v98
    %v148 = vunpack.c.l.b16 %v99
    %v149 = vunpack.c.l.b16 %v100
    %v150 = vunpack.c.l.b16 %v101
    %v151 = vunpack.c.l.b16 %v102
    %v152 = vunpack.c.l.b16 %v103
    %v153 = vunpack.c.l.b16 %v104
    %v154 = vpack.c.b16 %v139, %v138
    %v155 = vpack.c.b16 %v141, %v140
    %v156 = vpack.c.b16 %v143, %v142
    %v157 = vpack.c.b16 %v145, %v144
    %v158 = vpack.c.b16 %v147, %v146
    %v159 = vpack.c.b16 %v149, %v148
    %v160 = vpack.c.b16 %v151, %v150
    %v161 = vpack.c.b16 %v153, %v152
    %vm162 = vcmask 261120
    %v164 = vsel %vm162, %v120, 0
    %v167 = vsel %vm162, %v121, 0
    %v170 = vsel %vm162, %v154, 0
    %v173 = vsel %vm162, %v155, 0
    %v176 = vsel %vm162, %v156, 0
    %v179 = vsel %vm162, %v157, 0
    %v182 = vsel %vm162, %v158, 0
    %v185 = vsel %vm162, %v159, 0
    %v188 = vsel %vm162, %v160, 0
    %v191 = vsel %vm162, %v161, 0
    %193 = vmatprep.subr.bf16.mxu0 0
    %194 = vmatpush1.bf16.xpose.msra.mxu0 %v170
    %195 = vmatprep.subr.bf16.mxu0 0
    %196 = vmatpush1.bf16.xpose.msra.mxu0 %v173
    %197 = vmatprep.subr.bf16.mxu0 0
    %198 = vmatpush1.bf16.xpose.msra.mxu0 %v176
    %199 = vmatprep.subr.bf16.mxu0 0
    %200 = vmatpush1.bf16.xpose.msra.mxu0 %v179
    %201 = vmatprep.subr.bf16.mxu0 0
    %202 = vmatpush1.bf16.xpose.msra.mxu0 %v182
    %203 = vmatprep.subr.bf16.mxu0 0
    %204 = vmatpush1.bf16.xpose.msra.mxu0 %v185
    %205 = vmatprep.subr.bf16.mxu0 0
    %206 = vmatpush1.bf16.xpose.msra.mxu0 %v188
    %207 = vmatprep.subr.bf16.mxu0 0
    %208 = vmatpush1.bf16.xpose.msra.mxu0 %v191
    %209 = vmatprep.subr.bf16.mxu0 0
    %210 = vmatpush1.bf16.xpose.msra.mxu0 0
    %211 = vmatprep.subr.bf16.mxu0 0
    %212 = vmatpush1.bf16.xpose.msra.mxu0 0
    %213 = vmatprep.subr.bf16.mxu0 0
    %214 = vmatpush1.bf16.xpose.msra.mxu0 0
    %215 = vmatprep.subr.bf16.mxu0 0
    %216 = vmatpush1.bf16.xpose.msra.mxu0 0
    %217 = vmatprep.subr.bf16.mxu0 0
    %218 = vmatpush1.bf16.xpose.msra.mxu0 0
    %219 = vmatprep.subr.bf16.mxu0 0
    %220 = vmatpush1.bf16.xpose.msra.mxu0 0
    %221 = vmatprep.subr.bf16.mxu0 0
    %222 = vmatpush1.bf16.xpose.msra.mxu0 0
    %223 = vmatprep.subr.bf16.mxu0 0
    %224 = vmatpush1.bf16.xpose.msra.mxu0 0
    %225 = vmatprep.mubr.bf16.mxu0 0
    %226 = vmatmul.mubr.bf16.gmra.mrb[0].mxu0 %v164
    %v227 = vpop.f32.mrb[0].mxu0
    %v228 = vadd.f32 %v110, %v227
    %v229 = vpop.f32.mrb[0].mxu0
    %v230 = vpop.f32.mrb[0].mxu0
    %v231 = vadd.f32 %v110, %v230
    %v232 = vpop.f32.mrb[0].mxu0
    %233 = vmatprep.mubr.bf16.mxu0 0
    %234 = vmatmul.mubr.bf16.gmra.mrb[0].mxu0 %v167
    %v235 = vpop.f32.mrb[0].mxu0
    %v236 = vadd.f32 %v110, %v235
    %v237 = vpop.f32.mrb[0].mxu0
    %v238 = vpop.f32.mrb[0].mxu0
    %v239 = vadd.f32 %v110, %v238
    %v240 = vpop.f32.mrb[0].mxu0
    %241 = vdwg.mxu0
    %v242 = vld [vmem:[#allocation10] sm:$0xff]
    %vm243 = vnez %v242
    %v244 = vsel %vm243, 16843009, 0
    %v245 = vunpack.c.0.s8 %v244
    %v246 = vunpack.c.1.s8 %v244
    %v247 = vunpack.c.2.s8 %v244
    %v248 = vunpack.c.3.s8 %v244
    %v249 = vpack.c.b16 %v245, %v245
    %v250 = vpack.c.b8 %v249, %v249
    %v251 = vpack.c.b16 %v246, %v246
    %v252 = vpack.c.b8 %v251, %v251
    %v253 = vpack.c.b16 %v247, %v247
    %v254 = vpack.c.b8 %v253, %v253
    %v255 = vpack.c.b16 %v248, %v248
    %v256 = vpack.c.b8 %v255, %v255
    %vm257 = vnez %v250
    %vm258 = vnez %v252
    %vm259 = vnez %v254
    %vm260 = vnez %v256
    %v261 = vsel %vm257, 16843009, 0
    %v262 = vsel %vm258, 16843009, 0
    %v263 = vsel %vm259, 16843009, 0
    %v264 = vsel %vm260, 16843009, 0
    %v265 = vunpack.c.0.s8 %v261
    %v266 = vunpack.c.0.s8 %v262
    %v267 = vunpack.c.0.s8 %v263
    %v268 = vunpack.c.0.s8 %v264
    %vm269 = vcmp.ne.s32.totalorder %v265, 0
    %vm270 = vcmp.ne.s32.totalorder %v266, 0
    %vm271 = vcmp.ne.s32.totalorder %v267, 0
    %vm272 = vcmp.ne.s32.totalorder %v268, 0
    %v273 = vsel %vm269, -1e+30, %v228
    %v274 = vsel %vm270, -1e+30, %v231
    %v275 = vsel %vm271, -1e+30, %v236
    %v276 = vsel %vm272, -1e+30, %v239
    %v277 = vlaneseq
    %v278 = vand.u32 %v277, 127
    %s279 = smul.u32 0, 128
    %v280 = vstv %s279
    %v281 = vadd.s32 %v278, %v280
    %282 = vmax.xlane.f32.xlu0 %v273
    %v283 = vpop.xlane.xlu0 %282
    %284 = vmax.xlane.f32.xlu0 %v274
    %v285 = vpop.xlane.xlu0 %284
    %286 = vmax.xlane.f32.xlu0 %v275
    %v287 = vpop.xlane.xlu0 %286
    %288 = vmax.xlane.f32.xlu0 %v276
    %v289 = vpop.xlane.xlu0 %288
    %vm290 = vcmp.eq.f32.partialorder %v273, %v283
    %vm291 = vcmp.eq.f32.partialorder %v274, %v285
    %vm292 = vcmp.eq.f32.partialorder %v275, %v287
    %vm293 = vcmp.eq.f32.partialorder %v276, %v289
    %v294 = vsel %vm290, %v281, 1073741824
    %v295 = vsel %vm291, %v281, 1073741824
    %v296 = vsel %vm292, %v281, 1073741824
    %v297 = vsel %vm293, %v281, 1073741824
    %v298 = vand.u32 %v294, 65535
    %v299 = vshra.s32 %v294, 16
    %v300 = vcvt.s32.f32 %v298
    %v301 = vcvt.s32.f32 %v299
    %302 = vmin.xlane.f32.xlu0 %v301
    %v303 = vpop.xlane.xlu0 %302
    %vm304 = vcmp.eq.f32.partialorder %v301, %v303
    %v305 = vsel %vm304, %v300, inf
    %306 = vmin.xlane.f32.xlu0 %v305
    %v307 = vpop.xlane.xlu0 %306
    %v308 = vcvt.f32.s32 %v307
    %v309 = vcvt.f32.s32 %v303
    %v310 = vshll.u32 %v309, 16
    %v311 = vadd.s32 %v310, %v308
    %v312 = vand.u32 %v295, 65535
    %v313 = vshra.s32 %v295, 16
    %v314 = vcvt.s32.f32 %v312
    %v315 = vcvt.s32.f32 %v313
    %316 = vmin.xlane.f32.xlu0 %v315
    %v317 = vpop.xlane.xlu0 %316
    %vm318 = vcmp.eq.f32.partialorder %v315, %v317
    %v319 = vsel %vm318, %v314, inf
    %320 = vmin.xlane.f32.xlu0 %v319
    %v321 = vpop.xlane.xlu0 %320
    %v322 = vcvt.f32.s32 %v321
    %v323 = vcvt.f32.s32 %v317
    %v324 = vshll.u32 %v323, 16
    %v325 = vadd.s32 %v324, %v322
    %v326 = vand.u32 %v296, 65535
    %v327 = vshra.s32 %v296, 16
    %v328 = vcvt.s32.f32 %v326
    %v329 = vcvt.s32.f32 %v327
    %330 = vmin.xlane.f32.xlu0 %v329
    %v331 = vpop.xlane.xlu0 %330
    %vm332 = vcmp.eq.f32.partialorder %v329, %v331
    %v333 = vsel %vm332, %v328, inf
    %334 = vmin.xlane.f32.xlu0 %v333
    %v335 = vpop.xlane.xlu0 %334
    %v336 = vcvt.f32.s32 %v335
    %v337 = vcvt.f32.s32 %v331
    %v338 = vshll.u32 %v337, 16
    %v339 = vadd.s32 %v338, %v336
    %v340 = vand.u32 %v297, 65535
    %v341 = vshra.s32 %v297, 16
    %v342 = vcvt.s32.f32 %v340
    %v343 = vcvt.s32.f32 %v341
    %344 = vmin.xlane.f32.xlu0 %v343
    %v345 = vpop.xlane.xlu0 %344
    %vm346 = vcmp.eq.f32.partialorder %v343, %v345
    %v347 = vsel %vm346, %v342, inf
    %348 = vmin.xlane.f32.xlu0 %v347
    %v349 = vpop.xlane.xlu0 %348
    %v350 = vcvt.f32.s32 %v349
    %v351 = vcvt.f32.s32 %v345
    %v352 = vshll.u32 %v351, 16
    %v353 = vadd.s32 %v352, %v350
    %vm354 = vcmp.eq.s32.totalorder %v281, %v311
    %vm355 = vcmp.eq.s32.totalorder %v281, %v325
    %vm356 = vcmp.eq.s32.totalorder %v281, %v339
    %vm357 = vcmp.eq.s32.totalorder %v281, %v353
    %v358 = vsel %vm354, -inf, %v273
    %v359 = vsel %vm355, -inf, %v274
    %v360 = vsel %vm356, -inf, %v275
    %v361 = vsel %vm357, -inf, %v276
    %362 = vmax.xlane.f32.xlu0 %v358
    %v363 = vpop.xlane.xlu0 %362
    %364 = vmax.xlane.f32.xlu0 %v359
    %v365 = vpop.xlane.xlu0 %364
    %366 = vmax.xlane.f32.xlu0 %v360
    %v367 = vpop.xlane.xlu0 %366
    %368 = vmax.xlane.f32.xlu0 %v361
    %v369 = vpop.xlane.xlu0 %368
    %vm370 = vcmp.eq.f32.partialorder %v358, %v363
    %vm371 = vcmp.eq.f32.partialorder %v359, %v365
    %vm372 = vcmp.eq.f32.partialorder %v360, %v367
    %vm373 = vcmp.eq.f32.partialorder %v361, %v369
    %v374 = vsel %vm370, %v281, 1073741824
    %v375 = vsel %vm371, %v281, 1073741824
    %v376 = vsel %vm372, %v281, 1073741824
    %v377 = vsel %vm373, %v281, 1073741824
    %v378 = vand.u32 %v374, 65535
    %v379 = vshra.s32 %v374, 16
    %v380 = vcvt.s32.f32 %v378
    %v381 = vcvt.s32.f32 %v379
    %382 = vmin.xlane.f32.xlu0 %v381
    %v383 = vpop.xlane.xlu0 %382
    %vm384 = vcmp.eq.f32.partialorder %v381, %v383
    %v385 = vsel %vm384, %v380, inf
    %386 = vmin.xlane.f32.xlu0 %v385
    %v387 = vpop.xlane.xlu0 %386
    %v388 = vcvt.f32.s32 %v387
    %v389 = vcvt.f32.s32 %v383
    %v390 = vshll.u32 %v389, 16
    %v391 = vadd.s32 %v390, %v388
    %v392 = vand.u32 %v375, 65535
    %v393 = vshra.s32 %v375, 16
    %v394 = vcvt.s32.f32 %v392
    %v395 = vcvt.s32.f32 %v393
    %396 = vmin.xlane.f32.xlu0 %v395
    %v397 = vpop.xlane.xlu0 %396
    %vm398 = vcmp.eq.f32.partialorder %v395, %v397
    %v399 = vsel %vm398, %v394, inf
    %400 = vmin.xlane.f32.xlu0 %v399
    %v401 = vpop.xlane.xlu0 %400
    %v402 = vcvt.f32.s32 %v401
    %v403 = vcvt.f32.s32 %v397
    %v404 = vshll.u32 %v403, 16
    %v405 = vadd.s32 %v404, %v402
    %v406 = vand.u32 %v376, 65535
    %v407 = vshra.s32 %v376, 16
    %v408 = vcvt.s32.f32 %v406
    %v409 = vcvt.s32.f32 %v407
    %410 = vmin.xlane.f32.xlu0 %v409
    %v411 = vpop.xlane.xlu0 %410
    %vm412 = vcmp.eq.f32.partialorder %v409, %v411
    %v413 = vsel %vm412, %v408, inf
    %414 = vmin.xlane.f32.xlu0 %v413
    %v415 = vpop.xlane.xlu0 %414
    %v416 = vcvt.f32.s32 %v415
    %v417 = vcvt.f32.s32 %v411
    %v418 = vshll.u32 %v417, 16
    %v419 = vadd.s32 %v418, %v416
    %v420 = vand.u32 %v377, 65535
    %v421 = vshra.s32 %v377, 16
    %v422 = vcvt.s32.f32 %v420
    %v423 = vcvt.s32.f32 %v421
    %424 = vmin.xlane.f32.xlu0 %v423
    %v425 = vpop.xlane.xlu0 %424
    %vm426 = vcmp.eq.f32.partialorder %v423, %v425
    %v427 = vsel %vm426, %v422, inf
    %428 = vmin.xlane.f32.xlu0 %v427
    %v429 = vpop.xlane.xlu0 %428
    %v430 = vcvt.f32.s32 %v429
    %v431 = vcvt.f32.s32 %v425
    %v432 = vshll.u32 %v431, 16
    %v433 = vadd.s32 %v432, %v430
    %vm434 = vcmp.eq.s32.totalorder %v281, %v391
    %vm435 = vcmp.eq.s32.totalorder %v281, %v405
    %vm436 = vcmp.eq.s32.totalorder %v281, %v419
    %vm437 = vcmp.eq.s32.totalorder %v281, %v433
    %v438 = vsel %vm434, -inf, %v358
    %v439 = vsel %vm435, -inf, %v359
    %v440 = vsel %vm436, -inf, %v360
    %v441 = vsel %vm437, -inf, %v361
    %442 = vmax.xlane.f32.xlu0 %v438
    %v443 = vpop.xlane.xlu0 %442
    %444 = vmax.xlane.f32.xlu0 %v439
    %v445 = vpop.xlane.xlu0 %444
    %446 = vmax.xlane.f32.xlu0 %v440
    %v447 = vpop.xlane.xlu0 %446
    %448 = vmax.xlane.f32.xlu0 %v441
    %v449 = vpop.xlane.xlu0 %448
    %vm450 = vcmp.eq.f32.partialorder %v438, %v443
    %vm451 = vcmp.eq.f32.partialorder %v439, %v445
    %vm452 = vcmp.eq.f32.partialorder %v440, %v447
    %vm453 = vcmp.eq.f32.partialorder %v441, %v449
    %v454 = vsel %vm450, %v281, 1073741824
    %v455 = vsel %vm451, %v281, 1073741824
    %v456 = vsel %vm452, %v281, 1073741824
    %v457 = vsel %vm453, %v281, 1073741824
    %v458 = vand.u32 %v454, 65535
    %v459 = vshra.s32 %v454, 16
    %v460 = vcvt.s32.f32 %v458
    %v461 = vcvt.s32.f32 %v459
    %462 = vmin.xlane.f32.xlu0 %v461
    %v463 = vpop.xlane.xlu0 %462
    %vm464 = vcmp.eq.f32.partialorder %v461, %v463
    %v465 = vsel %vm464, %v460, inf
    %466 = vmin.xlane.f32.xlu0 %v465
    %v467 = vpop.xlane.xlu0 %466
    %v468 = vcvt.f32.s32 %v467
    %v469 = vcvt.f32.s32 %v463
    %v470 = vshll.u32 %v469, 16
    %v471 = vadd.s32 %v470, %v468
    %v472 = vand.u32 %v455, 65535
    %v473 = vshra.s32 %v455, 16
    %v474 = vcvt.s32.f32 %v472
    %v475 = vcvt.s32.f32 %v473
    %476 = vmin.xlane.f32.xlu0 %v475
    %v477 = vpop.xlane.xlu0 %476
    %vm478 = vcmp.eq.f32.partialorder %v475, %v477
    %v479 = vsel %vm478, %v474, inf
    %480 = vmin.xlane.f32.xlu0 %v479
    %v481 = vpop.xlane.xlu0 %480
    %v482 = vcvt.f32.s32 %v481
    %v483 = vcvt.f32.s32 %v477
    %v484 = vshll.u32 %v483, 16
    %v485 = vadd.s32 %v484, %v482
    %v486 = vand.u32 %v456, 65535
    %v487 = vshra.s32 %v456, 16
    %v488 = vcvt.s32.f32 %v486
    %v489 = vcvt.s32.f32 %v487
    %490 = vmin.xlane.f32.xlu0 %v489
    %v491 = vpop.xlane.xlu0 %490
    %vm492 = vcmp.eq.f32.partialorder %v489, %v491
    %v493 = vsel %vm492, %v488, inf
    %494 = vmin.xlane.f32.xlu0 %v493
    %v495 = vpop.xlane.xlu0 %494
    %v496 = vcvt.f32.s32 %v495
    %v497 = vcvt.f32.s32 %v491
    %v498 = vshll.u32 %v497, 16
    %v499 = vadd.s32 %v498, %v496
    %v500 = vand.u32 %v457, 65535
    %v501 = vshra.s32 %v457, 16
    %v502 = vcvt.s32.f32 %v500
    %v503 = vcvt.s32.f32 %v501
    %504 = vmin.xlane.f32.xlu0 %v503
    %v505 = vpop.xlane.xlu0 %504
    %vm506 = vcmp.eq.f32.partialorder %v503, %v505
    %v507 = vsel %vm506, %v502, inf
    %508 = vmin.xlane.f32.xlu0 %v507
    %v509 = vpop.xlane.xlu0 %508
    %v510 = vcvt.f32.s32 %v509
    %v511 = vcvt.f32.s32 %v505
    %v512 = vshll.u32 %v511, 16
    %v513 = vadd.s32 %v512, %v510
    %vm514 = vcmp.eq.s32.totalorder %v281, %v471
    %vm515 = vcmp.eq.s32.totalorder %v281, %v485
    %vm516 = vcmp.eq.s32.totalorder %v281, %v499
    %vm517 = vcmp.eq.s32.totalorder %v281, %v513
    %v518 = vsel %vm514, -inf, %v438
    %v519 = vsel %vm515, -inf, %v439
    %v520 = vsel %vm516, -inf, %v440
    %v521 = vsel %vm517, -inf, %v441
    %522 = vmax.xlane.f32.xlu0 %v518
    %v523 = vpop.xlane.xlu0 %522
    %524 = vmax.xlane.f32.xlu0 %v519
    %v525 = vpop.xlane.xlu0 %524
    %526 = vmax.xlane.f32.xlu0 %v520
    %v527 = vpop.xlane.xlu0 %526
    %528 = vmax.xlane.f32.xlu0 %v521
    %v529 = vpop.xlane.xlu0 %528
    %vm530 = vcmp.eq.f32.partialorder %v518, %v523
    %vm531 = vcmp.eq.f32.partialorder %v519, %v525
    %vm532 = vcmp.eq.f32.partialorder %v520, %v527
    %vm533 = vcmp.eq.f32.partialorder %v521, %v529
    %v534 = vsel %vm530, %v281, 1073741824
    %v535 = vsel %vm531, %v281, 1073741824
    %v536 = vsel %vm532, %v281, 1073741824
    %v537 = vsel %vm533, %v281, 1073741824
    %v538 = vand.u32 %v534, 65535
    %v539 = vshra.s32 %v534, 16
    %v540 = vcvt.s32.f32 %v538
    %v541 = vcvt.s32.f32 %v539
    %542 = vmin.xlane.f32.xlu0 %v541
    %v543 = vpop.xlane.xlu0 %542
    %vm544 = vcmp.eq.f32.partialorder %v541, %v543
    %v545 = vsel %vm544, %v540, inf
    %546 = vmin.xlane.f32.xlu0 %v545
    %v547 = vpop.xlane.xlu0 %546
    %v548 = vcvt.f32.s32 %v547
    %v549 = vcvt.f32.s32 %v543
    %v550 = vshll.u32 %v549, 16
    %v551 = vadd.s32 %v550, %v548
    %v552 = vand.u32 %v535, 65535
    %v553 = vshra.s32 %v535, 16
    %v554 = vcvt.s32.f32 %v552
    %v555 = vcvt.s32.f32 %v553
    %556 = vmin.xlane.f32.xlu0 %v555
    %v557 = vpop.xlane.xlu0 %556
    %vm558 = vcmp.eq.f32.partialorder %v555, %v557
    %v559 = vsel %vm558, %v554, inf
    %560 = vmin.xlane.f32.xlu0 %v559
    %v561 = vpop.xlane.xlu0 %560
    %v562 = vcvt.f32.s32 %v561
    %v563 = vcvt.f32.s32 %v557
    %v564 = vshll.u32 %v563, 16
    %v565 = vadd.s32 %v564, %v562
    %v566 = vand.u32 %v536, 65535
    %v567 = vshra.s32 %v536, 16
    %v568 = vcvt.s32.f32 %v566
    %v569 = vcvt.s32.f32 %v567
    %570 = vmin.xlane.f32.xlu0 %v569
    %v571 = vpop.xlane.xlu0 %570
    %vm572 = vcmp.eq.f32.partialorder %v569, %v571
    %v573 = vsel %vm572, %v568, inf
    %574 = vmin.xlane.f32.xlu0 %v573
    %v575 = vpop.xlane.xlu0 %574
    %v576 = vcvt.f32.s32 %v575
    %v577 = vcvt.f32.s32 %v571
    %v578 = vshll.u32 %v577, 16
    %v579 = vadd.s32 %v578, %v576
    %v580 = vand.u32 %v537, 65535
    %v581 = vshra.s32 %v537, 16
    %v582 = vcvt.s32.f32 %v580
    %v583 = vcvt.s32.f32 %v581
    %584 = vmin.xlane.f32.xlu0 %v583
    %v585 = vpop.xlane.xlu0 %584
    %vm586 = vcmp.eq.f32.partialorder %v583, %v585
    %v587 = vsel %vm586, %v582, inf
    %588 = vmin.xlane.f32.xlu0 %v587
    %v589 = vpop.xlane.xlu0 %588
    %v590 = vcvt.f32.s32 %v589
    %v591 = vcvt.f32.s32 %v585
    %v592 = vshll.u32 %v591, 16
    %v593 = vadd.s32 %v592, %v590
    %vm594 = vcmp.eq.s32.totalorder %v281, %v551
    %vm595 = vcmp.eq.s32.totalorder %v281, %v565
    %vm596 = vcmp.eq.s32.totalorder %v281, %v579
    %vm597 = vcmp.eq.s32.totalorder %v281, %v593
    %v598 = vsel %vm594, -inf, %v518
    %v599 = vsel %vm595, -inf, %v519
    %v600 = vsel %vm596, -inf, %v520
    %v601 = vsel %vm597, -inf, %v521
    %602 = vmax.xlane.f32.xlu0 %v598
    %v603 = vpop.xlane.xlu0 %602
    %604 = vmax.xlane.f32.xlu0 %v599
    %v605 = vpop.xlane.xlu0 %604
    %606 = vmax.xlane.f32.xlu0 %v600
    %v607 = vpop.xlane.xlu0 %606
    %608 = vmax.xlane.f32.xlu0 %v601
    %v609 = vpop.xlane.xlu0 %608
    %vm610 = vcmp.eq.f32.partialorder %v598, %v603
    %vm611 = vcmp.eq.f32.partialorder %v599, %v605
    %vm612 = vcmp.eq.f32.partialorder %v600, %v607
    %vm613 = vcmp.eq.f32.partialorder %v601, %v609
    %v614 = vsel %vm610, %v281, 1073741824
    %v615 = vsel %vm611, %v281, 1073741824
    %v616 = vsel %vm612, %v281, 1073741824
    %v617 = vsel %vm613, %v281, 1073741824
    %v618 = vand.u32 %v614, 65535
    %v619 = vshra.s32 %v614, 16
    %v620 = vcvt.s32.f32 %v618
    %v621 = vcvt.s32.f32 %v619
    %622 = vmin.xlane.f32.xlu0 %v621
    %v623 = vpop.xlane.xlu0 %622
    %vm624 = vcmp.eq.f32.partialorder %v621, %v623
    %v625 = vsel %vm624, %v620, inf
    %626 = vmin.xlane.f32.xlu0 %v625
    %v627 = vpop.xlane.xlu0 %626
    %v628 = vcvt.f32.s32 %v627
    %v629 = vcvt.f32.s32 %v623
    %v630 = vshll.u32 %v629, 16
    %v631 = vadd.s32 %v630, %v628
    %v632 = vand.u32 %v615, 65535
    %v633 = vshra.s32 %v615, 16
    %v634 = vcvt.s32.f32 %v632
    %v635 = vcvt.s32.f32 %v633
    %636 = vmin.xlane.f32.xlu0 %v635
    %v637 = vpop.xlane.xlu0 %636
    %vm638 = vcmp.eq.f32.partialorder %v635, %v637
    %v639 = vsel %vm638, %v634, inf
    %640 = vmin.xlane.f32.xlu0 %v639
    %v641 = vpop.xlane.xlu0 %640
    %v642 = vcvt.f32.s32 %v641
    %v643 = vcvt.f32.s32 %v637
    %v644 = vshll.u32 %v643, 16
    %v645 = vadd.s32 %v644, %v642
    %v646 = vand.u32 %v616, 65535
    %v647 = vshra.s32 %v616, 16
    %v648 = vcvt.s32.f32 %v646
    %v649 = vcvt.s32.f32 %v647
    %650 = vmin.xlane.f32.xlu0 %v649
    %v651 = vpop.xlane.xlu0 %650
    %vm652 = vcmp.eq.f32.partialorder %v649, %v651
    %v653 = vsel %vm652, %v648, inf
    %654 = vmin.xlane.f32.xlu0 %v653
    %v655 = vpop.xlane.xlu0 %654
    %v656 = vcvt.f32.s32 %v655
    %v657 = vcvt.f32.s32 %v651
    %v658 = vshll.u32 %v657, 16
    %v659 = vadd.s32 %v658, %v656
    %v660 = vand.u32 %v617, 65535
    %v661 = vshra.s32 %v617, 16
    %v662 = vcvt.s32.f32 %v660
    %v663 = vcvt.s32.f32 %v661
    %664 = vmin.xlane.f32.xlu0 %v663
    %v665 = vpop.xlane.xlu0 %664
    %vm666 = vcmp.eq.f32.partialorder %v663, %v665
    %v667 = vsel %vm666, %v662, inf
    %668 = vmin.xlane.f32.xlu0 %v667
    %v669 = vpop.xlane.xlu0 %668
    %v670 = vcvt.f32.s32 %v669
    %v671 = vcvt.f32.s32 %v665
    %v672 = vshll.u32 %v671, 16
    %v673 = vadd.s32 %v672, %v670
    %vm674 = vcmask 7168
    %v675 = vsel %vm674, %v283, %v363
    %v676 = vsel %vm674, %v285, %v365
    %v677 = vsel %vm674, %v287, %v367
    %v678 = vsel %vm674, %v289, %v369
    %vm679 = vcmask 15360
    %v680 = vsel %vm679, %v675, %v443
    %v681 = vsel %vm679, %v676, %v445
    %v682 = vsel %vm679, %v677, %v447
    %v683 = vsel %vm679, %v678, %v449
    %vm684 = vcmask 23552
    %v685 = vsel %vm684, %v680, %v523
    %v686 = vsel %vm684, %v681, %v525
    %v687 = vsel %vm684, %v682, %v527
    %v688 = vsel %vm684, %v683, %v529
    %vm689 = vcmask 31744
    %v690 = vsel %vm689, %v685, %v603
    %v691 = vsel %vm689, %v686, %v605
    %v692 = vsel %vm689, %v687, %v607
    %v693 = vsel %vm689, %v688, %v609
    %v694 = vsel %vm674, %v311, %v391
    %v695 = vsel %vm674, %v325, %v405
    %v696 = vsel %vm674, %v339, %v419
    %v697 = vsel %vm674, %v353, %v433
    %v698 = vsel %vm679, %v694, %v471
    %v699 = vsel %vm679, %v695, %v485
    %v700 = vsel %vm679, %v696, %v499
    %v701 = vsel %vm679, %v697, %v513
    %v702 = vsel %vm684, %v698, %v551
    %v703 = vsel %vm684, %v699, %v565
    %v704 = vsel %vm684, %v700, %v579
    %v705 = vsel %vm684, %v701, %v593
    %v706 = vsel %vm689, %v702, %v631
    %v707 = vsel %vm689, %v703, %v645
    %v708 = vsel %vm689, %v704, %v659
    %v709 = vsel %vm689, %v705, %v673
    %v710 = vld [vmem:[#allocation2] sm:$0xff]
    %v711 = vld [vmem:[#allocation2 + $0x8] sm:$0xff]
    %v712 = vld [vmem:[#allocation2 + $0x10] sm:$0xff]
    %v713 = vld [vmem:[#allocation2 + $0x18] sm:$0xff]
    %718 = vrot.lane.b32.xlu0 %v690, 5
    %v719 = vpop.permute.xlu0 %718
    %720 = vrot.lane.b32.xlu0 %v691, 5
    %v721 = vpop.permute.xlu0 %720
    %722 = vrot.lane.b32.xlu0 %v692, 5
    %v723 = vpop.permute.xlu0 %722
    %724 = vrot.lane.b32.xlu0 %v693, 5
    %v725 = vpop.permute.xlu0 %724
    %vm730 = vcmask 39936
    %v731 = vsel %vm730, %v710, %v719
    %v732 = vsel %vm730, %v711, %v721
    %v733 = vsel %vm730, %v712, %v723
    %v734 = vsel %vm730, %v713, %v725
    %v735 = vld [vmem:[#allocation3] sm:$0xff]
    %v736 = vld [vmem:[#allocation3 + $0x8] sm:$0xff]
    %v737 = vld [vmem:[#allocation3 + $0x10] sm:$0xff]
    %v738 = vld [vmem:[#allocation3 + $0x18] sm:$0xff]
    %739 = vrot.lane.b32.xlu0 %v706, 5
    %v740 = vpop.permute.xlu0 %739
    %741 = vrot.lane.b32.xlu0 %v707, 5
    %v742 = vpop.permute.xlu0 %741
    %743 = vrot.lane.b32.xlu0 %v708, 5
    %v744 = vpop.permute.xlu0 %743
    %745 = vrot.lane.b32.xlu0 %v709, 5
    %v746 = vpop.permute.xlu0 %745
    %v747 = vsel %vm730, %v735, %v740
    %v748 = vsel %vm730, %v736, %v742
    %v749 = vsel %vm730, %v737, %v744
    %v750 = vsel %vm730, %v738, %v746
    %vm751 = vcmask 80896
    %v752 = vsel %vm751, %v731, -inf
    %753 = vmax.xlane.f32.xlu0 %v752
    %v754 = vpop.xlane.xlu0 %753
    %v755 = vsel %vm751, %v732, -inf
    %756 = vmax.xlane.f32.xlu0 %v755
    %v757 = vpop.xlane.xlu0 %756
    %v758 = vsel %vm751, %v733, -inf
    %759 = vmax.xlane.f32.xlu0 %v758
    %v760 = vpop.xlane.xlu0 %759
    %v761 = vsel %vm751, %v734, -inf
    %762 = vmax.xlane.f32.xlu0 %v761
    %v763 = vpop.xlane.xlu0 %762
    %vm764 = vcmp.eq.f32.partialorder %v731, %v754
    %vm765 = vcmp.eq.f32.partialorder %v732, %v757
    %vm766 = vcmp.eq.f32.partialorder %v733, %v760
    %vm767 = vcmp.eq.f32.partialorder %v734, %v763
    %v768 = vsel %vm764, %v747, 1073741824
    %v769 = vsel %vm765, %v748, 1073741824
    %v770 = vsel %vm766, %v749, 1073741824
    %v771 = vsel %vm767, %v750, 1073741824
    %v772 = vsel %vm751, %v768, 2147483647
    %v773 = vand.u32 %v772, 65535
    %v774 = vshra.s32 %v772, 16
    %v775 = vcvt.s32.f32 %v773
    %v776 = vcvt.s32.f32 %v774
    %777 = vmin.xlane.f32.xlu0 %v776
    %v778 = vpop.xlane.xlu0 %777
    %vm779 = vcmp.eq.f32.partialorder %v776, %v778
    %v780 = vsel %vm779, %v775, inf
    %781 = vmin.xlane.f32.xlu0 %v780
    %v782 = vpop.xlane.xlu0 %781
    %v783 = vcvt.f32.s32 %v782
    %v784 = vcvt.f32.s32 %v778
    %v785 = vshll.u32 %v784, 16
    %v786 = vadd.s32 %v785, %v783
    %v787 = vsel %vm751, %v769, 2147483647
    %v788 = vand.u32 %v787, 65535
    %v789 = vshra.s32 %v787, 16
    %v790 = vcvt.s32.f32 %v788
    %v791 = vcvt.s32.f32 %v789
    %792 = vmin.xlane.f32.xlu0 %v791
    %v793 = vpop.xlane.xlu0 %792
    %vm794 = vcmp.eq.f32.partialorder %v791, %v793
    %v795 = vsel %vm794, %v790, inf
    %796 = vmin.xlane.f32.xlu0 %v795
    %v797 = vpop.xlane.xlu0 %796
    %v798 = vcvt.f32.s32 %v797
    %v799 = vcvt.f32.s32 %v793
    %v800 = vshll.u32 %v799, 16
    %v801 = vadd.s32 %v800, %v798
    %v802 = vsel %vm751, %v770, 2147483647
    %v803 = vand.u32 %v802, 65535
    %v804 = vshra.s32 %v802, 16
    %v805 = vcvt.s32.f32 %v803
    %v806 = vcvt.s32.f32 %v804
    %807 = vmin.xlane.f32.xlu0 %v806
    %v808 = vpop.xlane.xlu0 %807
    %vm809 = vcmp.eq.f32.partialorder %v806, %v808
    %v810 = vsel %vm809, %v805, inf
    %811 = vmin.xlane.f32.xlu0 %v810
    %v812 = vpop.xlane.xlu0 %811
    %v813 = vcvt.f32.s32 %v812
    %v814 = vcvt.f32.s32 %v808
    %v815 = vshll.u32 %v814, 16
    %v816 = vadd.s32 %v815, %v813
    %v817 = vsel %vm751, %v771, 2147483647
    %v818 = vand.u32 %v817, 65535
    %v819 = vshra.s32 %v817, 16
    %v820 = vcvt.s32.f32 %v818
    %v821 = vcvt.s32.f32 %v819
    %822 = vmin.xlane.f32.xlu0 %v821
    %v823 = vpop.xlane.xlu0 %822
    %vm824 = vcmp.eq.f32.partialorder %v821, %v823
    %v825 = vsel %vm824, %v820, inf
    %826 = vmin.xlane.f32.xlu0 %v825
    %v827 = vpop.xlane.xlu0 %826
    %v828 = vcvt.f32.s32 %v827
    %v829 = vcvt.f32.s32 %v823
    %v830 = vshll.u32 %v829, 16
    %v831 = vadd.s32 %v830, %v828
    %vm832 = vcmp.eq.s32.totalorder %v747, %v786
    %vm833 = vcmp.eq.s32.totalorder %v748, %v801
    %vm834 = vcmp.eq.s32.totalorder %v749, %v816
    %vm835 = vcmp.eq.s32.totalorder %v750, %v831
    %v836 = vsel %vm832, -inf, %v731
    %v837 = vsel %vm833, -inf, %v732
    %v838 = vsel %vm834, -inf, %v733
    %v839 = vsel %vm835, -inf, %v734
    %v840 = vsel %vm751, %v836, -inf
    %841 = vmax.xlane.f32.xlu0 %v840
    %v842 = vpop.xlane.xlu0 %841
    %v843 = vsel %vm751, %v837, -inf
    %844 = vmax.xlane.f32.xlu0 %v843
    %v845 = vpop.xlane.xlu0 %844
    %v846 = vsel %vm751, %v838, -inf
    %847 = vmax.xlane.f32.xlu0 %v846
    %v848 = vpop.xlane.xlu0 %847
    %v849 = vsel %vm751, %v839, -inf
    %850 = vmax.xlane.f32.xlu0 %v849
    %v851 = vpop.xlane.xlu0 %850
    %vm852 = vcmp.eq.f32.partialorder %v836, %v842
    %vm853 = vcmp.eq.f32.partialorder %v837, %v845
    %vm854 = vcmp.eq.f32.partialorder %v838, %v848
    %vm855 = vcmp.eq.f32.partialorder %v839, %v851
    %v856 = vsel %vm852, %v747, 1073741824
    %v857 = vsel %vm853, %v748, 1073741824
    %v858 = vsel %vm854, %v749, 1073741824
    %v859 = vsel %vm855, %v750, 1073741824
    %v860 = vsel %vm751, %v856, 2147483647
    %v861 = vand.u32 %v860, 65535
    %v862 = vshra.s32 %v860, 16
    %v863 = vcvt.s32.f32 %v861
    %v864 = vcvt.s32.f32 %v862
    %865 = vmin.xlane.f32.xlu0 %v864
    %v866 = vpop.xlane.xlu0 %865
    %vm867 = vcmp.eq.f32.partialorder %v864, %v866
    %v868 = vsel %vm867, %v863, inf
    %869 = vmin.xlane.f32.xlu0 %v868
    %v870 = vpop.xlane.xlu0 %869
    %v871 = vcvt.f32.s32 %v870
    %v872 = vcvt.f32.s32 %v866
    %v873 = vshll.u32 %v872, 16
    %v874 = vadd.s32 %v873, %v871
    %v875 = vsel %vm751, %v857, 2147483647
    %v876 = vand.u32 %v875, 65535
    %v877 = vshra.s32 %v875, 16
    %v878 = vcvt.s32.f32 %v876
    %v879 = vcvt.s32.f32 %v877
    %880 = vmin.xlane.f32.xlu0 %v879
    %v881 = vpop.xlane.xlu0 %880
    %vm882 = vcmp.eq.f32.partialorder %v879, %v881
    %v883 = vsel %vm882, %v878, inf
    %884 = vmin.xlane.f32.xlu0 %v883
    %v885 = vpop.xlane.xlu0 %884
    %v886 = vcvt.f32.s32 %v885
    %v887 = vcvt.f32.s32 %v881
    %v888 = vshll.u32 %v887, 16
    %v889 = vadd.s32 %v888, %v886
    %v890 = vsel %vm751, %v858, 2147483647
    %v891 = vand.u32 %v890, 65535
    %v892 = vshra.s32 %v890, 16
    %v893 = vcvt.s32.f32 %v891
    %v894 = vcvt.s32.f32 %v892
    %895 = vmin.xlane.f32.xlu0 %v894
    %v896 = vpop.xlane.xlu0 %895
    %vm897 = vcmp.eq.f32.partialorder %v894, %v896
    %v898 = vsel %vm897, %v893, inf
    %899 = vmin.xlane.f32.xlu0 %v898
    %v900 = vpop.xlane.xlu0 %899
    %v901 = vcvt.f32.s32 %v900
    %v902 = vcvt.f32.s32 %v896
    %v903 = vshll.u32 %v902, 16
    %v904 = vadd.s32 %v903, %v901
    %v905 = vsel %vm751, %v859, 2147483647
    %v906 = vand.u32 %v905, 65535
    %v907 = vshra.s32 %v905, 16
    %v908 = vcvt.s32.f32 %v906
    %v909 = vcvt.s32.f32 %v907
    %910 = vmin.xlane.f32.xlu0 %v909
    %v911 = vpop.xlane.xlu0 %910
    %vm912 = vcmp.eq.f32.partialorder %v909, %v911
    %v913 = vsel %vm912, %v908, inf
    %914 = vmin.xlane.f32.xlu0 %v913
    %v915 = vpop.xlane.xlu0 %914
    %v916 = vcvt.f32.s32 %v915
    %v917 = vcvt.f32.s32 %v911
    %v918 = vshll.u32 %v917, 16
    %v919 = vadd.s32 %v918, %v916
    %vm920 = vcmp.eq.s32.totalorder %v747, %v874
    %vm921 = vcmp.eq.s32.totalorder %v748, %v889
    %vm922 = vcmp.eq.s32.totalorder %v749, %v904
    %vm923 = vcmp.eq.s32.totalorder %v750, %v919
    %v924 = vsel %vm920, -inf, %v836
    %v925 = vsel %vm921, -inf, %v837
    %v926 = vsel %vm922, -inf, %v838
    %v927 = vsel %vm923, -inf, %v839
    %v928 = vsel %vm751, %v924, -inf
    %929 = vmax.xlane.f32.xlu0 %v928
    %v930 = vpop.xlane.xlu0 %929
    %v931 = vsel %vm751, %v925, -inf
    %932 = vmax.xlane.f32.xlu0 %v931
    %v933 = vpop.xlane.xlu0 %932
    %v934 = vsel %vm751, %v926, -inf
    %935 = vmax.xlane.f32.xlu0 %v934
    %v936 = vpop.xlane.xlu0 %935
    %v937 = vsel %vm751, %v927, -inf
    %938 = vmax.xlane.f32.xlu0 %v937
    %v939 = vpop.xlane.xlu0 %938
    %vm940 = vcmp.eq.f32.partialorder %v924, %v930
    %vm941 = vcmp.eq.f32.partialorder %v925, %v933
    %vm942 = vcmp.eq.f32.partialorder %v926, %v936
    %vm943 = vcmp.eq.f32.partialorder %v927, %v939
    %v944 = vsel %vm940, %v747, 1073741824
    %v945 = vsel %vm941, %v748, 1073741824
    %v946 = vsel %vm942, %v749, 1073741824
    %v947 = vsel %vm943, %v750, 1073741824
    %v948 = vsel %vm751, %v944, 2147483647
    %v949 = vand.u32 %v948, 65535
    %v950 = vshra.s32 %v948, 16
    %v951 = vcvt.s32.f32 %v949
    %v952 = vcvt.s32.f32 %v950
    %953 = vmin.xlane.f32.xlu0 %v952
    %v954 = vpop.xlane.xlu0 %953
    %vm955 = vcmp.eq.f32.partialorder %v952, %v954
    %v956 = vsel %vm955, %v951, inf
    %957 = vmin.xlane.f32.xlu0 %v956
    %v958 = vpop.xlane.xlu0 %957
    %v959 = vcvt.f32.s32 %v958
    %v960 = vcvt.f32.s32 %v954
    %v961 = vshll.u32 %v960, 16
    %v962 = vadd.s32 %v961, %v959
    %v963 = vsel %vm751, %v945, 2147483647
    %v964 = vand.u32 %v963, 65535
    %v965 = vshra.s32 %v963, 16
    %v966 = vcvt.s32.f32 %v964
    %v967 = vcvt.s32.f32 %v965
    %968 = vmin.xlane.f32.xlu0 %v967
    %v969 = vpop.xlane.xlu0 %968
    %vm970 = vcmp.eq.f32.partialorder %v967, %v969
    %v971 = vsel %vm970, %v966, inf
    %972 = vmin.xlane.f32.xlu0 %v971
    %v973 = vpop.xlane.xlu0 %972
    %v974 = vcvt.f32.s32 %v973
    %v975 = vcvt.f32.s32 %v969
    %v976 = vshll.u32 %v975, 16
    %v977 = vadd.s32 %v976, %v974
    %v978 = vsel %vm751, %v946, 2147483647
    %v979 = vand.u32 %v978, 65535
    %v980 = vshra.s32 %v978, 16
    %v981 = vcvt.s32.f32 %v979
    %v982 = vcvt.s32.f32 %v980
    %983 = vmin.xlane.f32.xlu0 %v982
    %v984 = vpop.xlane.xlu0 %983
    %vm985 = vcmp.eq.f32.partialorder %v982, %v984
    %v986 = vsel %vm985, %v981, inf
    %987 = vmin.xlane.f32.xlu0 %v986
    %v988 = vpop.xlane.xlu0 %987
    %v989 = vcvt.f32.s32 %v988
    %v990 = vcvt.f32.s32 %v984
    %v991 = vshll.u32 %v990, 16
    %v992 = vadd.s32 %v991, %v989
    %v993 = vsel %vm751, %v947, 2147483647
    %v994 = vand.u32 %v993, 65535
    %v995 = vshra.s32 %v993, 16
    %v996 = vcvt.s32.f32 %v994
    %v997 = vcvt.s32.f32 %v995
    %998 = vmin.xlane.f32.xlu0 %v997
    %v999 = vpop.xlane.xlu0 %998
    %vm1000 = vcmp.eq.f32.partialorder %v997, %v999
    %v1001 = vsel %vm1000, %v996, inf
    %1002 = vmin.xlane.f32.xlu0 %v1001
    %v1003 = vpop.xlane.xlu0 %1002
    %v1004 = vcvt.f32.s32 %v1003
    %v1005 = vcvt.f32.s32 %v999
    %v1006 = vshll.u32 %v1005, 16
    %v1007 = vadd.s32 %v1006, %v1004
    %vm1008 = vcmp.eq.s32.totalorder %v747, %v962
    %vm1009 = vcmp.eq.s32.totalorder %v748, %v977
    %vm1010 = vcmp.eq.s32.totalorder %v749, %v992
    %vm1011 = vcmp.eq.s32.totalorder %v750, %v1007
    %v1012 = vsel %vm1008, -inf, %v924
    %v1013 = vsel %vm1009, -inf, %v925
    %v1014 = vsel %vm1010, -inf, %v926
    %v1015 = vsel %vm1011, -inf, %v927
    %v1016 = vsel %vm751, %v1012, -inf
    %1017 = vmax.xlane.f32.xlu0 %v1016
    %v1018 = vpop.xlane.xlu0 %1017
    %v1019 = vsel %vm751, %v1013, -inf
    %1020 = vmax.xlane.f32.xlu0 %v1019
    %v1021 = vpop.xlane.xlu0 %1020
    %v1022 = vsel %vm751, %v1014, -inf
    %1023 = vmax.xlane.f32.xlu0 %v1022
    %v1024 = vpop.xlane.xlu0 %1023
    %v1025 = vsel %vm751, %v1015, -inf
    %1026 = vmax.xlane.f32.xlu0 %v1025
    %v1027 = vpop.xlane.xlu0 %1026
    %vm1028 = vcmp.eq.f32.partialorder %v1012, %v1018
    %vm1029 = vcmp.eq.f32.partialorder %v1013, %v1021
    %vm1030 = vcmp.eq.f32.partialorder %v1014, %v1024
    %vm1031 = vcmp.eq.f32.partialorder %v1015, %v1027
    %v1032 = vsel %vm1028, %v747, 1073741824
    %v1033 = vsel %vm1029, %v748, 1073741824
    %v1034 = vsel %vm1030, %v749, 1073741824
    %v1035 = vsel %vm1031, %v750, 1073741824
    %v1036 = vsel %vm751, %v1032, 2147483647
    %v1037 = vand.u32 %v1036, 65535
    %v1038 = vshra.s32 %v1036, 16
    %v1039 = vcvt.s32.f32 %v1037
    %v1040 = vcvt.s32.f32 %v1038
    %1041 = vmin.xlane.f32.xlu0 %v1040
    %v1042 = vpop.xlane.xlu0 %1041
    %vm1043 = vcmp.eq.f32.partialorder %v1040, %v1042
    %v1044 = vsel %vm1043, %v1039, inf
    %1045 = vmin.xlane.f32.xlu0 %v1044
    %v1046 = vpop.xlane.xlu0 %1045
    %v1047 = vcvt.f32.s32 %v1046
    %v1048 = vcvt.f32.s32 %v1042
    %v1049 = vshll.u32 %v1048, 16
    %v1050 = vadd.s32 %v1049, %v1047
    %v1051 = vsel %vm751, %v1033, 2147483647
    %v1052 = vand.u32 %v1051, 65535
    %v1053 = vshra.s32 %v1051, 16
    %v1054 = vcvt.s32.f32 %v1052
    %v1055 = vcvt.s32.f32 %v1053
    %1056 = vmin.xlane.f32.xlu0 %v1055
    %v1057 = vpop.xlane.xlu0 %1056
    %vm1058 = vcmp.eq.f32.partialorder %v1055, %v1057
    %v1059 = vsel %vm1058, %v1054, inf
    %1060 = vmin.xlane.f32.xlu0 %v1059
    %v1061 = vpop.xlane.xlu0 %1060
    %v1062 = vcvt.f32.s32 %v1061
    %v1063 = vcvt.f32.s32 %v1057
    %v1064 = vshll.u32 %v1063, 16
    %v1065 = vadd.s32 %v1064, %v1062
    %v1066 = vsel %vm751, %v1034, 2147483647
    %v1067 = vand.u32 %v1066, 65535
    %v1068 = vshra.s32 %v1066, 16
    %v1069 = vcvt.s32.f32 %v1067
    %v1070 = vcvt.s32.f32 %v1068
    %1071 = vmin.xlane.f32.xlu0 %v1070
    %v1072 = vpop.xlane.xlu0 %1071
    %vm1073 = vcmp.eq.f32.partialorder %v1070, %v1072
    %v1074 = vsel %vm1073, %v1069, inf
    %1075 = vmin.xlane.f32.xlu0 %v1074
    %v1076 = vpop.xlane.xlu0 %1075
    %v1077 = vcvt.f32.s32 %v1076
    %v1078 = vcvt.f32.s32 %v1072
    %v1079 = vshll.u32 %v1078, 16
    %v1080 = vadd.s32 %v1079, %v1077
    %v1081 = vsel %vm751, %v1035, 2147483647
    %v1082 = vand.u32 %v1081, 65535
    %v1083 = vshra.s32 %v1081, 16
    %v1084 = vcvt.s32.f32 %v1082
    %v1085 = vcvt.s32.f32 %v1083
    %1086 = vmin.xlane.f32.xlu0 %v1085
    %v1087 = vpop.xlane.xlu0 %1086
    %vm1088 = vcmp.eq.f32.partialorder %v1085, %v1087
    %v1089 = vsel %vm1088, %v1084, inf
    %1090 = vmin.xlane.f32.xlu0 %v1089
    %v1091 = vpop.xlane.xlu0 %1090
    %v1092 = vcvt.f32.s32 %v1091
    %v1093 = vcvt.f32.s32 %v1087
    %v1094 = vshll.u32 %v1093, 16
    %v1095 = vadd.s32 %v1094, %v1092
    %vm1096 = vcmp.eq.s32.totalorder %v747, %v1050
    %vm1097 = vcmp.eq.s32.totalorder %v748, %v1065
    %vm1098 = vcmp.eq.s32.totalorder %v749, %v1080
    %vm1099 = vcmp.eq.s32.totalorder %v750, %v1095
    %v1100 = vsel %vm1096, -inf, %v1012
    %v1101 = vsel %vm1097, -inf, %v1013
    %v1102 = vsel %vm1098, -inf, %v1014
    %v1103 = vsel %vm1099, -inf, %v1015
    %v1104 = vsel %vm751, %v1100, -inf
    %1105 = vmax.xlane.f32.xlu0 %v1104
    %v1106 = vpop.xlane.xlu0 %1105
    %v1107 = vsel %vm751, %v1101, -inf
    %1108 = vmax.xlane.f32.xlu0 %v1107
    %v1109 = vpop.xlane.xlu0 %1108
    %v1110 = vsel %vm751, %v1102, -inf
    %1111 = vmax.xlane.f32.xlu0 %v1110
    %v1112 = vpop.xlane.xlu0 %1111
    %v1113 = vsel %vm751, %v1103, -inf
    %1114 = vmax.xlane.f32.xlu0 %v1113
    %v1115 = vpop.xlane.xlu0 %1114
    %vm1116 = vcmp.eq.f32.partialorder %v1100, %v1106
    %vm1117 = vcmp.eq.f32.partialorder %v1101, %v1109
    %vm1118 = vcmp.eq.f32.partialorder %v1102, %v1112
    %vm1119 = vcmp.eq.f32.partialorder %v1103, %v1115
    %v1120 = vsel %vm1116, %v747, 1073741824
    %v1121 = vsel %vm1117, %v748, 1073741824
    %v1122 = vsel %vm1118, %v749, 1073741824
    %v1123 = vsel %vm1119, %v750, 1073741824
    %v1124 = vsel %vm751, %v1120, 2147483647
    %v1125 = vand.u32 %v1124, 65535
    %v1126 = vshra.s32 %v1124, 16
    %v1127 = vcvt.s32.f32 %v1125
    %v1128 = vcvt.s32.f32 %v1126
    %1129 = vmin.xlane.f32.xlu0 %v1128
    %v1130 = vpop.xlane.xlu0 %1129
    %vm1131 = vcmp.eq.f32.partialorder %v1128, %v1130
    %v1132 = vsel %vm1131, %v1127, inf
    %1133 = vmin.xlane.f32.xlu0 %v1132
    %v1134 = vpop.xlane.xlu0 %1133
    %v1135 = vcvt.f32.s32 %v1134
    %v1136 = vcvt.f32.s32 %v1130
    %v1137 = vshll.u32 %v1136, 16
    %v1138 = vadd.s32 %v1137, %v1135
    %v1139 = vsel %vm751, %v1121, 2147483647
    %v1140 = vand.u32 %v1139, 65535
    %v1141 = vshra.s32 %v1139, 16
    %v1142 = vcvt.s32.f32 %v1140
    %v1143 = vcvt.s32.f32 %v1141
    %1144 = vmin.xlane.f32.xlu0 %v1143
    %v1145 = vpop.xlane.xlu0 %1144
    %vm1146 = vcmp.eq.f32.partialorder %v1143, %v1145
    %v1147 = vsel %vm1146, %v1142, inf
    %1148 = vmin.xlane.f32.xlu0 %v1147
    %v1149 = vpop.xlane.xlu0 %1148
    %v1150 = vcvt.f32.s32 %v1149
    %v1151 = vcvt.f32.s32 %v1145
    %v1152 = vshll.u32 %v1151, 16
    %v1153 = vadd.s32 %v1152, %v1150
    %v1154 = vsel %vm751, %v1122, 2147483647
    %v1155 = vand.u32 %v1154, 65535
    %v1156 = vshra.s32 %v1154, 16
    %v1157 = vcvt.s32.f32 %v1155
    %v1158 = vcvt.s32.f32 %v1156
    %1159 = vmin.xlane.f32.xlu0 %v1158
    %v1160 = vpop.xlane.xlu0 %1159
    %vm1161 = vcmp.eq.f32.partialorder %v1158, %v1160
    %v1162 = vsel %vm1161, %v1157, inf
    %1163 = vmin.xlane.f32.xlu0 %v1162
    %v1164 = vpop.xlane.xlu0 %1163
    %v1165 = vcvt.f32.s32 %v1164
    %v1166 = vcvt.f32.s32 %v1160
    %v1167 = vshll.u32 %v1166, 16
    %v1168 = vadd.s32 %v1167, %v1165
    %v1169 = vsel %vm751, %v1123, 2147483647
    %v1170 = vand.u32 %v1169, 65535
    %v1171 = vshra.s32 %v1169, 16
    %v1172 = vcvt.s32.f32 %v1170
    %v1173 = vcvt.s32.f32 %v1171
    %1174 = vmin.xlane.f32.xlu0 %v1173
    %v1175 = vpop.xlane.xlu0 %1174
    %vm1176 = vcmp.eq.f32.partialorder %v1173, %v1175
    %v1177 = vsel %vm1176, %v1172, inf
    %1178 = vmin.xlane.f32.xlu0 %v1177
    %v1179 = vpop.xlane.xlu0 %1178
    %v1180 = vcvt.f32.s32 %v1179
    %v1181 = vcvt.f32.s32 %v1175
    %v1182 = vshll.u32 %v1181, 16
    %v1183 = vadd.s32 %v1182, %v1180
    %v1184 = vsel %vm674, %v754, %v842
    %v1185 = vsel %vm674, %v757, %v845
    %v1186 = vsel %vm674, %v760, %v848
    %v1187 = vsel %vm674, %v763, %v851
    %v1188 = vsel %vm679, %v1184, %v930
    %v1189 = vsel %vm679, %v1185, %v933
    %v1190 = vsel %vm679, %v1186, %v936
    %v1191 = vsel %vm679, %v1187, %v939
    %v1192 = vsel %vm684, %v1188, %v1018
    %v1193 = vsel %vm684, %v1189, %v1021
    %v1194 = vsel %vm684, %v1190, %v1024
    %v1195 = vsel %vm684, %v1191, %v1027
    %v1196 = vsel %vm689, %v1192, %v1106
    %v1197 = vsel %vm689, %v1193, %v1109
    %v1198 = vsel %vm689, %v1194, %v1112
    %v1199 = vsel %vm689, %v1195, %v1115
    %1200 = vst.msk [vmem:[#allocation2] sm:$0xff] %vm730, %v1196
    %1201 = vst.msk [vmem:[#allocation2 + $0x8] sm:$0xff] %vm730, %v1197
    %1202 = vst.msk [vmem:[#allocation2 + $0x10] sm:$0xff] %vm730, %v1198
    %1203 = vst.msk [vmem:[#allocation2 + $0x18] sm:$0xff] %vm730, %v1199
    %v1204 = vsel %vm674, %v786, %v874
    %v1205 = vsel %vm674, %v801, %v889
    %v1206 = vsel %vm674, %v816, %v904
    %v1207 = vsel %vm674, %v831, %v919
    %v1208 = vsel %vm679, %v1204, %v962
    %v1209 = vsel %vm679, %v1205, %v977
    %v1210 = vsel %vm679, %v1206, %v992
    %v1211 = vsel %vm679, %v1207, %v1007
    %v1212 = vsel %vm684, %v1208, %v1050
    %v1213 = vsel %vm684, %v1209, %v1065
    %v1214 = vsel %vm684, %v1210, %v1080
    %v1215 = vsel %vm684, %v1211, %v1095
    %v1216 = vsel %vm689, %v1212, %v1138
    %v1217 = vsel %vm689, %v1213, %v1153
    %v1218 = vsel %vm689, %v1214, %v1168
    %v1219 = vsel %vm689, %v1215, %v1183
    %1220 = vst.msk [vmem:[#allocation3] sm:$0xff] %vm730, %v1216
    %1221 = vst.msk [vmem:[#allocation3 + $0x8] sm:$0xff] %vm730, %v1217
    %1222 = vst.msk [vmem:[#allocation3 + $0x10] sm:$0xff] %vm730, %v1218
    %1223 = vst.msk [vmem:[#allocation3 + $0x18] sm:$0xff] %vm730, %v1219
    // Predicated region
    $region38: #{generator_forward.1} parent=1 // pred_check
      %p1224 = pneg %p72
    $region39: #{generator_forward.1} parent=1 // pred_check_branch
      %1226 = sbr.rel (%p1224) target = $region41
    $region40: #{generator_forward.1} parent=1 // pred_region
      %v1227 = vld [vmem:[#allocation3] sm:$0xff]
      %v1228 = vld [vmem:[#allocation3 + $0x8] sm:$0xff]
      %v1229 = vld [vmem:[#allocation3 + $0x10] sm:$0xff]
      %v1230 = vld [vmem:[#allocation3 + $0x18] sm:$0xff]
      %1231 = vst.msk [vmem:[#allocation12] sm:$0xff] %vm730, %v1227
      %1232 = vst.msk [vmem:[#allocation12 + $0x8] sm:$0xff] %vm730, %v1228
      %1233 = vst.msk [vmem:[#allocation12 + $0x10] sm:$0xff] %vm730, %v1229
      %1234 = vst.msk [vmem:[#allocation12 + $0x18] sm:$0xff] %vm730, %v1230
    $region41: #{generator_forward.1} parent=1 // pred_fallthru
      _
    // Predicated region
    $region42: #{generator_forward.1} parent=1 // pred_check
      _
    $region43: #{generator_forward.1} parent=1 // pred_check_branch
      %1236 = sbr.rel (0) target = $region45
    $region44: #{generator_forward.1} parent=1 // pred_region
      %s1238 = ssub.s32 512, 512
      %1239 = vsyncadd [#allocation6], %s1238
      %s1240 = sshll.u32 [#allocation12], 4
      %s1241 = int_to_ptr.vmem [resolvable:$true] %s1240
      %1246 = dma.vmem_to_hbm [thread:$0]  %s1241, 512, %s4, [#allocation6], 128, 128, 8
    $region45: #{generator_forward.1} parent=1 // pred_fallthru
      _
    // Predicated region
    $region46: #{generator_forward.1} parent=1 // pred_check
      _
    $region47: #{generator_forward.1} parent=1 // pred_check_branch
      %1248 = sbr.rel (0) target = $region49
    $region48: #{generator_forward.1} parent=1 // pred_region
      %1249 = dma.done [#allocation6], 512
    $region49: #{generator_forward.1} parent=1 // pred_fallthru
      _
    %1250 = vsyncpa [#allocation5], 1
    %1251 = vsyncpa [#allocation8], 1
    %1252 = vsyncpa [#allocation11], 1
    %1253 = vsyncpa [#allocation6], 1

</llo_original>
